<compile_context>
chip_gen: v7x
topology: tpu7x:2x2x1
jax: 0.10.0
libtpu: 0.0.40
codegen_flags: <defaults>
</compile_context>

<pallas_src>
import functools
from typing import NamedTuple

import numpy as np

import jax
import jax.numpy as jnp
from jax.experimental import pallas as pl
from jax.experimental.pallas import tpu as pltpu


_LANE = 128
_ROW_WIDTH = 512                  # lanes per packed row (multiple of 128)
_MAX_BLOCK_ROWS = 4096            # rows DMA'd per grid step: 8 MiB f32 / 4 MiB bf16 blocks
_SUB_ROWS = 512                   # rows per in-kernel compute sub-tile (caps f32 temporaries)
_VMEM_LIMIT = 48 * 1024 * 1024    # < v7x 64 MiB physical; overrides v5e's 16 MiB scoped default


def _round_up(x, m):
    return ((x + m - 1) // m) * m


def _abs_pow(x, p):
    """|x|^p elementwise, avoiding the EUP pow (log+exp) path for integer p."""
    if p == 2:
        return x * x
    if p == 1:
        return jnp.abs(x)
    if isinstance(p, int) and p > 2:
        ax = jnp.abs(x)
        e = ax
        for _ in range(p - 1):
            e = e * ax
        return e
    # non-integer p > 0: generic pow (lowers to log+exp on the EUP).
    return jnp.abs(x) ** p


def _reg_kernel(starts_ref, ends_ref, w_ref, out_ref, *, p, nwp, block_rows, sub_rows):
    """grid = (core, step); `step` walks row-blocks of the packed slab (reduction axis).

    starts_ref/ends_ref : (1, nwp) int32 -- first / one-past-last packed-row index of each
                          weight slot (static metadata, DMA'd once and resident).
    w_ref               : (block_rows, W) packed weight rows (native dtype).
    out_ref             : (8, nwp) f32   -- per-weight partial sums of |x|^p, resident across
                          the step axis (one block per core).
    """
    j = pl.program_id(1)

    @pl.when(j == 0)
    def _():
        out_ref[...] = jnp.zeros_like(out_ref)

    # Global row index of the first row of this block.
    base = (pl.program_id(0) * pl.num_programs(1) + j) * block_rows
    starts = starts_ref[...]                                        # (1, nwp)
    ends = ends_ref[...]                                            # (1, nwp)

    def sub_tile(t, acc):
        r0 = t * sub_rows
        if not isinstance(t, int):
            r0 = pl.multiple_of(r0, sub_rows)
        x = w_ref[pl.ds(r0, sub_rows), :].astype(jnp.float32)       # (SR, W)
        e = _abs_pow(x, p)                                          # |x|^p
        row_sums = jnp.sum(e, axis=1, keepdims=True)                # (SR, 1)  XLU lane reduce
        gidx = jax.lax.broadcasted_iota(jnp.int32, (sub_rows, nwp), 0) + (base + r0)
        onehot = (gidx >= starts) & (gidx < ends)                   # (SR, nwp) row -> slot mask
        scattered = jnp.where(onehot, row_sums, 0.0)                # (SR, nwp)
        # Fold groups of 8 consecutive rows onto the 8 sublanes of the accumulator.
        return acc + jnp.sum(scattered.reshape(sub_rows // 8, 8, nwp), axis=0)

    acc0 = jnp.zeros((8, nwp), jnp.float32)
    n_sub = block_rows // sub_rows
    if n_sub == 1:
        acc = sub_tile(0, acc0)                                     # fully static small path
    else:
        acc = jax.lax.fori_loop(0, n_sub, sub_tile, acc0)
    out_ref[...] += acc


class _PackPlan(NamedTuple):
    dtype: object
    nw: int
    nwp: int
    rows_per_weight: tuple
    starts_np: object            # np.ndarray (nwp,) int32
    ends_np: object              # np.ndarray (nwp,) int32
    num_rows: int
    ncores: int
    n_steps: int
    block_rows: int
    sub_rows: int
    r_pad: int


def _plan_packing(weights):
    """Static packing geometry: depends only on shapes/dtypes -> build once per model."""
    # NOTE: mixed-precision weight lists are promoted to one slab dtype; if any weight is f32
    # the bf16 weights are re-materialized as f32 (extra HBM bytes, not a correctness issue).
    dtype = jnp.result_type(*[w.dtype for w in weights])
    nw = len(weights)
    nwp = _round_up(max(nw, 1), _LANE)

    rows_per_weight = []
    starts = np.zeros((nwp,), dtype=np.int32)
    ends = np.zeros((nwp,), dtype=np.int32)
    r = 0
    for i, w in enumerate(weights):
        n = int(np.prod(w.shape))
        rows = -(-n // _ROW_WIDTH)
        rows_per_weight.append(rows)
        starts[i] = r
        ends[i] = r + rows
        r += rows
    num_rows = r

    eff_rows = max(num_rows, 1)
    # 2-core split only when both cores have real work (>= 2 full blocks of rows).
    ncores = 2 if eff_rows >= 2 * _MAX_BLOCK_ROWS else 1
    rows_per_core = -(-eff_rows // ncores)
    n_steps = -(-rows_per_core // _MAX_BLOCK_ROWS)
    block_rows = _round_up(-(-rows_per_core // n_steps), 8)
    sub_rows = min(_SUB_ROWS, block_rows)
    block_rows = _round_up(block_rows, sub_rows)
    r_pad = ncores * n_steps * block_rows

    return _PackPlan(dtype, nw, nwp, tuple(rows_per_weight), starts, ends,
                     num_rows, ncores, n_steps, block_rows, sub_rows, r_pad)


def _pack_slab(weights, plan):
    """Flatten + zero-pad each weight to whole 512-lane rows; one concatenate, one reshape."""
    pieces = []
    for w, rows in zip(weights, plan.rows_per_weight):
        f = jnp.ravel(w).astype(plan.dtype)
        pad = rows * _ROW_WIDTH - f.shape[0]
        pieces.append(jnp.pad(f, (0, pad)) if pad else f)
    tail = plan.r_pad - plan.num_rows
    if tail > 0:
        pieces.append(jnp.zeros((tail * _ROW_WIDTH,), dtype=plan.dtype))
    return jnp.concatenate(pieces).reshape(plan.r_pad, _ROW_WIDTH)


def _norm_pow_sums(data, starts, ends, plan, p):
    """Launch the kernel; returns (nwp,) per-weight sums of |x|^p (f32)."""
    kernel = functools.partial(_reg_kernel, p=p, nwp=plan.nwp,
                               block_rows=plan.block_rows, sub_rows=plan.sub_rows)
    n_steps = plan.n_steps
    partial_sums = pl.pallas_call(
        kernel,
        out_shape=jax.ShapeDtypeStruct((plan.ncores * 8, plan.nwp), jnp.float32),
        grid=(plan.ncores, plan.n_steps),
        in_specs=[
            pl.BlockSpec((1, plan.nwp), lambda c, j: (0, 0)),              # starts (resident)
            pl.BlockSpec((1, plan.nwp), lambda c, j: (0, 0)),              # ends   (resident)
            pl.BlockSpec((plan.block_rows, _ROW_WIDTH),
                         lambda c, j: (c * n_steps + j, 0)),               # data stream
        ],
        out_specs=pl.BlockSpec((8, plan.nwp), lambda c, j: (c, 0)),
        compiler_params=pltpu.CompilerParams(
            dimension_semantics=("parallel", "arbitrary"),
            vmem_limit_bytes=_VMEM_LIMIT,
        ),
    )(starts, ends, data)
    return jnp.sum(partial_sums, axis=0)


def _finalize(acc_pow_sums, nw, weight_decay, p):
    acc = acc_pow_sums[:nw]                      # per-weight sum of |x|^p
    if p == 2:
        norms = jnp.sqrt(acc)
    elif p == 1:
        norms = acc
    else:
        norms = acc ** (1.0 / p)
    return jnp.float32(weight_decay) * jnp.sum(norms)


def regularization_loss(weight_list, weight_decay, p=2, plan=None):
    """Functional API. weight_list: list of (name, array) like named_parameters() on 'weight'."""
    if weight_decay <= 0:
        raise ValueError("param weight_decay can not <= 0")
    if p <= 0:
        # TODO(synk): torch.norm(p=0) (count of non-zeros) is not supported here.
        raise NotImplementedError("only p > 0 norms are supported")
    weights = [w for _, w in weight_list]
    if not weights:
        return jnp.float32(0.0)
    if plan is None:
        plan = _plan_packing(weights)
    if plan.num_rows == 0:
        return jnp.float32(0.0)
    starts = jnp.asarray(plan.starts_np).reshape(1, plan.nwp)
    ends = jnp.asarray(plan.ends_np).reshape(1, plan.nwp)
    data = _pack_slab(weights, plan)
    return _finalize(_norm_pow_sums(data, starts, ends, plan, p), plan.nw, weight_decay, p)


class Regularization:
    """Forward-pass port of the PyTorch `Regularization` module.

    Packing plan + boundary table are built once from the weight shapes in __init__ and reused
    across forward calls; only the value repack + kernel run happen per call.
    (There is no `model` object to traverse here: the caller passes the already-filtered
    (name, array) weight list, equivalent to get_weight(model).)
    """

    def __init__(self, weight_list, weight_decay, p=2):
        if weight_decay <= 0:
            raise ValueError("param weight_decay can not <= 0")
        if p <= 0:
            # TODO(synk): torch.norm(p=0) (count of non-zeros) is not supported here.
            raise NotImplementedError("only p > 0 norms are supported")
        self.weight_decay = weight_decay
        self.p = p
        self.weight_list = weight_list
        self._plan = _plan_packing([w for _, w in weight_list])
        self._starts = jnp.asarray(self._plan.starts_np).reshape(1, self._plan.nwp)
        self._ends = jnp.asarray(self._plan.ends_np).reshape(1, self._plan.nwp)
        self.weight_info(weight_list)

    def weight_info(self, weight_list):
        print('---------------regularization weight---------------')
        for name, _ in weight_list:
            print(name)
        print('---------------------------------------------------')

    def __call__(self, weight_list=None):
        wl = self.weight_list if weight_list is None else weight_list
        weights = [w for _, w in wl]
        if not weights or self._plan.num_rows == 0:
            return jnp.float32(0.0)
        data = _pack_slab(weights, self._plan)
        acc = _norm_pow_sums(data, self._starts, self._ends, self._plan, self.p)
        return _finalize(acc, self._plan.nw, self.weight_decay, self.p)

    forward = __call__


def _make_synthetic_model_weights():
    """Deterministic stand-in for `model.named_parameters()` filtered on 'weight'
    (shapes loosely mimic a small GAT: attention layers + linear heads)."""
    key = jax.random.PRNGKey(0)
    shapes = {
        "gat1.lin.weight": (32, 16),
        "gat1.att_src.weight": (1, 4, 8),
        "gat1.att_dst.weight": (1, 4, 8),
        "gat2.lin.weight": (8, 32),
        "fc.weight": (4, 8),
        "fc2.weight": (64, 128),
        "embed.weight": (512, 512),   # multi-row weight -> exercises the in-kernel sub-tile loop
    }
    weight_list = []
    for name, shape in shapes.items():
        key, sub = jax.random.split(key)
        weight_list.append((name, jax.random.normal(sub, shape, dtype=jnp.float32) * 0.1))
    return weight_list


if __name__ == "__main__":
    weight_decay = 0.01
    weight_list = _make_synthetic_model_weights()

    # Module-style use: packing metadata built once, reused per forward call.
    reg = Regularization(weight_list, weight_decay, p=2)   # prints the weight_info listing
    loss = jax.block_until_ready(reg())

    # Pure-JAX reference: weight_decay * sum of per-tensor L2 norms.
    ref = weight_decay * sum(
        jnp.sqrt(jnp.sum(jnp.square(w.ravel().astype(jnp.float32)))) for _, w in weight_list)
    assert jnp.allclose(loss, ref, rtol=1e-5, atol=1e-6), (loss, ref)

    # Functional API, L1 path.
    loss_l1 = jax.block_until_ready(regularization_loss(weight_list, weight_decay, p=1))
    ref_l1 = weight_decay * sum(
        jnp.sum(jnp.abs(w.ravel().astype(jnp.float32))) for _, w in weight_list)
    assert jnp.allclose(loss_l1, ref_l1, rtol=1e-5, atol=1e-6), (loss_l1, ref_l1)

    print("KERNEL_OK")
</pallas_src>

<mosaic_0001>
module attributes {stable_mosaic.version = 11 : i64} {
  func.func @_reg_kernel(%arg0: i32, %arg1: i32, %arg2: memref<1x128xi32, #tpu.memory_space<vmem>>, %arg3: memref<1x128xi32, #tpu.memory_space<vmem>>, %arg4: memref<1024x512xf32, #tpu.memory_space<vmem>>, %arg5: memref<8x128xf32, #tpu.memory_space<vmem>>) attributes {dimension_semantics = [#tpu.dimension_semantics<parallel>, #tpu.dimension_semantics<arbitrary>], iteration_bounds = array<i64: 1, 1>, scalar_prefetch = 0 : i64, scratch_operands = 0 : i64, tpu.core_type = #tpu.core_type<tc>, window_params = [{pipeline_mode = #tpu.pipeline_mode<synchronous>, transform_indices = @transform_0, window_bounds = array<i64: 1, 128>}, {pipeline_mode = #tpu.pipeline_mode<synchronous>, transform_indices = @transform_1, window_bounds = array<i64: 1, 128>}, {transform_indices = @transform_2, window_bounds = array<i64: 1024, 512>}, {transform_indices = @transform_3, window_bounds = array<i64: 8, 128>}]} {
    %c0_i32 = arith.constant 0 : i32
    %0 = arith.cmpi eq, %arg1, %c0_i32 : i32
    %1 = arith.extui %0 : i1 to i32
    %c0_i32_0 = arith.constant 0 : i32
    %2 = arith.cmpi ne, %1, %c0_i32_0 : i32
    scf.if %2 {
      %cst_11 = arith.constant 0.000000e+00 : f32
      %14 = vector.broadcast %cst_11 : f32 to vector<8x128xf32>
      %c0_12 = arith.constant 0 : index
      %c0_13 = arith.constant 0 : index
      %15 = vector.load %arg5[%c0_12, %c0_13] : memref<8x128xf32, #tpu.memory_space<vmem>>, vector<8x128xf32>
      tpu.vector_store %arg5[%c0_12, %c0_13], %14 {strides = array<i32>} : memref<8x128xf32, #tpu.memory_space<vmem>>, vector<8x128xf32>,
    } else {
    }
    %c1_i32 = arith.constant 1 : i32
    %3 = arith.muli %arg0, %c1_i32 : i32
    %4 = arith.addi %3, %arg1 : i32
    %c1024_i32 = arith.constant 1024 : i32
    %5 = arith.muli %4, %c1024_i32 : i32
    %c0 = arith.constant 0 : index
    %c0_1 = arith.constant 0 : index
    %6 = vector.load %arg2[%c0, %c0_1] : memref<1x128xi32, #tpu.memory_space<vmem>>, vector<1x128xi32>
    %c0_2 = arith.constant 0 : index
    %c0_3 = arith.constant 0 : index
    %7 = vector.load %arg3[%c0_2, %c0_3] : memref<1x128xi32, #tpu.memory_space<vmem>>, vector<1x128xi32>
    %cst = arith.constant 0.000000e+00 : f32
    %8 = vector.broadcast %cst : f32 to vector<8x128xf32>
    %c0_i32_4 = arith.constant 0 : i32
    %c2_i32 = arith.constant 2 : i32
    %9 = arith.addi %c0_i32_4, %c2_i32 : i32
    %c1_i32_5 = arith.constant 1 : i32
    %10 = scf.for %arg6 = %c0_i32_4 to %9 step %c1_i32_5 iter_args(%arg7 = %8) -> (vector<8x128xf32>)  : i32 {
      %c512_i32 = arith.constant 512 : i32
      %14 = arith.muli %arg6, %c512_i32 : i32
      %15 = tpu.assume_multiple %14, 512 : i32
      %16 = arith.index_cast %15 : i32 to index
      %c0_11 = arith.constant 0 : index
      %17 = vector.load %arg4[%16, %c0_11] : memref<1024x512xf32, #tpu.memory_space<vmem>>, vector<512x512xf32>
      %18 = arith.mulf %17, %17 : vector<512x512xf32>
      %cst_12 = arith.constant dense<0.000000e+00> : vector<512xf32>
      %19 = vector.multi_reduction <add>, %18, %cst_12 [1] : vector<512x512xf32> to vector<512xf32>
      %20 = vector.shape_cast %19 : vector<512xf32> to vector<512x1xf32>
      %21 = tpu.iota {dimensions = array<i32: 0>} : vector<512x128xi32>
      %22 = arith.addi %5, %15 : i32
      %23 = vector.broadcast %22 : i32 to vector<512x128xi32>
      %24 = arith.addi %21, %23 : vector<512x128xi32>
      %25 = vector.broadcast %6 : vector<1x128xi32> to vector<512x128xi32>
      %26 = arith.cmpi sge, %24, %25 : vector<512x128xi32>
      %27 = vector.broadcast %7 : vector<1x128xi32> to vector<512x128xi32>
      %28 = arith.cmpi slt, %24, %27 : vector<512x128xi32>
      %29 = arith.andi %26, %28 : vector<512x128xi1>
      %cst_13 = arith.constant 0.000000e+00 : f32
      %30 = vector.shape_cast %20 : vector<512x1xf32> to vector<512x1xf32>
      %31 = vector.broadcast %30 : vector<512x1xf32> to vector<512x128xf32>
      %32 = vector.broadcast %cst_13 : f32 to vector<512x128xf32>
      %33 = arith.select %29, %31, %32 : vector<512x128xi1>, vector<512x128xf32>
      %34 = vector.shape_cast %33 : vector<512x128xf32> to vector<64x8x128xf32>
      %cst_14 = arith.constant dense<0.000000e+00> : vector<8x128xf32>
      %35 = vector.multi_reduction <add>, %34, %cst_14 [0] : vector<64x8x128xf32> to vector<8x128xf32>
      %36 = arith.addf %arg7, %35 : vector<8x128xf32>
      scf.yield %36 : vector<8x128xf32>
    }
    %c2_i32_6 = arith.constant 2 : i32
    %c0_7 = arith.constant 0 : index
    %c0_8 = arith.constant 0 : index
    %11 = vector.load %arg5[%c0_7, %c0_8] : memref<8x128xf32, #tpu.memory_space<vmem>>, vector<8x128xf32>
    %12 = arith.addf %11, %10 : vector<8x128xf32>
    %c0_9 = arith.constant 0 : index
    %c0_10 = arith.constant 0 : index
    %13 = vector.load %arg5[%c0_9, %c0_10] : memref<8x128xf32, #tpu.memory_space<vmem>>, vector<8x128xf32>
    tpu.vector_store %arg5[%c0_9, %c0_10], %12 {strides = array<i32>} : memref<8x128xf32, #tpu.memory_space<vmem>>, vector<8x128xf32>,
    return
  }
  func.func @transform_0(%arg0: i32, %arg1: i32) -> (i32, i32) {
    %c0_i32 = arith.constant 0 : i32
    %c0_i32_0 = arith.constant 0 : i32
    %c0_i32_1 = arith.constant 0 : i32
    return %c0_i32, %c0_i32_0 : i32, i32
  }
  func.func @transform_1(%arg0: i32, %arg1: i32) -> (i32, i32) {
    %c0_i32 = arith.constant 0 : i32
    %c0_i32_0 = arith.constant 0 : i32
    %c0_i32_1 = arith.constant 0 : i32
    return %c0_i32, %c0_i32_0 : i32, i32
  }
  func.func @transform_2(%arg0: i32, %arg1: i32) -> (i32, i32) {
    %c1_i32 = arith.constant 1 : i32
    %0 = arith.muli %arg0, %c1_i32 : i32
    %1 = arith.addi %0, %arg1 : i32
    %c0_i32 = arith.constant 0 : i32
    %c0_i32_0 = arith.constant 0 : i32
    return %1, %c0_i32 : i32, i32
  }
  func.func @transform_3(%arg0: i32, %arg1: i32) -> (i32, i32) {
    %c0_i32 = arith.constant 0 : i32
    %c0_i32_0 = arith.constant 0 : i32
    return %arg0, %c0_i32 : i32, i32
  }
}

</mosaic_0001>

<llo_original>
// kernel: tpu_custom_call.1
$region0: #{tpu_custom_call.1}
  #allocation0 [shape = 'u32[]', space=smem, size = 0x4, offset = 0x4, fixed_abs, tag = 'smem constant byte address 0x4 - core index']
  #allocation1 [shape = 'u32[144,128]{1,0:T(1,128)}', space=vmem, size = 0x12000, scoped, tag = 'internal scratch']
  %s0 = inlined_call_operand.hbm [shape: s32[1,128], index: 0, kind: input, shape index: {}]
  %s1 = inlined_call_operand.hbm [shape: s32[1,128], index: 1, kind: input, shape index: {}]
  %s2 = inlined_call_operand.hbm [shape: f32[1024,512], index: 2, kind: input, shape index: {}]
  %s3 = inlined_call_operand.hbm [shape: f32[8,128], index: 3, kind: output, shape index: {}]
  %s4 = sld [smem:[#allocation0]]
  $region45: #{tpu_custom_call.1} parent=0
    _
  %s6 = ssub.s32 1, %s4
  %s7 = scalar_select 0, %s6, %s4
  $region1: #{tpu_custom_call.1} parent=0
    #allocation2 [shape = 'u8[512]{0}', space=vmem, size = 0x400, scoped, tag = 'input window, operand 0, single buffered']
    #allocation3 [shape = 's32[1]{0}', space=sflag, size = 0x4, scoped, tag = 'scoped memory for tpu_custom_call.1']
    #allocation4 [shape = 's32[1]{0}', space=sflag, size = 0x4, scoped, tag = 'scoped memory for tpu_custom_call.1']
    #allocation5 [shape = 'u8[512]{0}', space=vmem, size = 0x400, scoped, tag = 'input window, operand 1, single buffered']
    #allocation6 [shape = 's32[1]{0}', space=sflag, size = 0x4, scoped, tag = 'scoped memory for tpu_custom_call.1']
    #allocation7 [shape = 'u8[2097152]{0}', space=vmem, size = 0x200000, scoped, tag = 'input window, operand 2, single buffered']
    #allocation8 [shape = 'u8[4096]{0}', space=vmem, size = 0x1000, scoped, tag = 'output window, operand 0, single buffered']
    %8 = vsyncpa [#allocation3], 0
    %9 = vsyncpa [#allocation6], 0
    %10 = vsyncpa [#allocation4], 0
    // Predicated region
    $region2: #{tpu_custom_call.1} parent=1 // pred_check
      _
    $region3: #{tpu_custom_call.1} parent=1 // pred_check_branch
      %12 = sbr.rel (0) target = $region5
    $region4: #{tpu_custom_call.1} parent=1 // pred_region
      %s14 = ssub.s32 16, 16
      %15 = vsyncadd [#allocation3], %s14
      %s17 = sshll.u32 [#allocation2], 4
      %s18 = int_to_ptr.vmem [resolvable:$true] %s17
      %20 = dma.hbm_to_vmem [thread:$0]  %s0, 16, %s18, [#allocation3]
    $region5: #{tpu_custom_call.1} parent=1 // pred_fallthru
      _
    // Predicated region
    $region6: #{tpu_custom_call.1} parent=1 // pred_check
      _
    $region7: #{tpu_custom_call.1} parent=1 // pred_check_branch
      %22 = sbr.rel (0) target = $region9
    $region8: #{tpu_custom_call.1} parent=1 // pred_region
      %s24 = ssub.s32 16, 16
      %25 = vsyncadd [#allocation6], %s24
      %s27 = sshll.u32 [#allocation5], 4
      %s28 = int_to_ptr.vmem [resolvable:$true] %s27
      %30 = dma.hbm_to_vmem [thread:$0]  %s1, 16, %s28, [#allocation6]
    $region9: #{tpu_custom_call.1} parent=1 // pred_fallthru
      _
    // Predicated region
    $region10: #{tpu_custom_call.1} parent=1 // pred_check
      _
    $region11: #{tpu_custom_call.1} parent=1 // pred_check_branch
      %32 = sbr.rel (0) target = $region13
    $region12: #{tpu_custom_call.1} parent=1 // pred_region
      %s33 = sadd.s32 0, 0
      %s34 = smul.u32 128, %s33
      %s36 = ssub.s32 65536, 65536
      %37 = vsyncadd [#allocation6], %s36
      %s38 = smul.addr %s34, 4
      %s39 = smul.addr %s38, 128
      %s40 = scalar_lea.hbm %s2, %s39
      %s41 = sshll.u32 [#allocation7], 4
      %s42 = int_to_ptr.vmem [resolvable:$true] %s41
      %47 = dma.hbm_to_vmem [thread:$0]  %s40, 65536, %s42, [#allocation6], 512, 512, 32
    $region13: #{tpu_custom_call.1} parent=1 // pred_fallthru
      _
    // Predicated region
    $region14: #{tpu_custom_call.1} parent=1 // pred_check
      _
    $region15: #{tpu_custom_call.1} parent=1 // pred_check_branch
      %49 = sbr.rel (0) target = $region17
    $region16: #{tpu_custom_call.1} parent=1 // pred_region
      %50 = dma.done [#allocation3], 16
    $region17: #{tpu_custom_call.1} parent=1 // pred_fallthru
      _
    // Predicated region
    $region18: #{tpu_custom_call.1} parent=1 // pred_check
      _
    $region19: #{tpu_custom_call.1} parent=1 // pred_check_branch
      %52 = sbr.rel (0) target = $region21
    $region20: #{tpu_custom_call.1} parent=1 // pred_region
      %53 = dma.done [#allocation6], 16
    $region21: #{tpu_custom_call.1} parent=1 // pred_fallthru
      _
    // Predicated region
    $region22: #{tpu_custom_call.1} parent=1 // pred_check
      _
    $region23: #{tpu_custom_call.1} parent=1 // pred_check_branch
      %55 = sbr.rel (0) target = $region25
    $region24: #{tpu_custom_call.1} parent=1 // pred_region
      %56 = dma.done [#allocation6], 65536
    $region25: #{tpu_custom_call.1} parent=1 // pred_fallthru
      _
    %s57 = sadd.s32 0, 0
    %s58 = smul.u32 128, %s57
    %p59 = scmp.eq.s32.totalorder 0, 0
    // Predicated region
    $region26: #{tpu_custom_call.1} parent=1 // pred_check
      %p60 = pneg %p59
    $region27: #{tpu_custom_call.1} parent=1 // pred_check_branch
      %62 = sbr.rel (%p60) target = $region29
    $region28: #{tpu_custom_call.1} parent=1 // pred_region
      %63 = vst [vmem:[#allocation8] sm:$0xff] 0.0
    $region29: #{tpu_custom_call.1} parent=1 // pred_fallthru
      _
    %s64 = sadd.s32 0, 0
    %s65 = smul.u32 %s64, 1024
    %v66 = vld [vmem:[#allocation2] sm:$0x1]
    %v67 = vld [vmem:[#allocation5] sm:$0x1]
    loop: start=0, step=1, limit=2
    $region30: #{tpu_custom_call.1} parent=1 // loop_pre_header
      _
    $region31: #{tpu_custom_call.1} parent=1 // loop_header
      %s69 = sphi 0, %s73
      %p70 = scmp.ge.s32.totalorder %s69, 2
      %v74 = vphi 0.0, %v1371
    $region32: #{tpu_custom_call.1} parent=1 // loop_header_branch
      %72 = sbr.rel (%p70) target = $region36
    $region33: #{tpu_custom_call.1} parent=1 // loop_body
      %s75 = smul.u32 %s69, 512
      %s76 = sshra.s32 %s75, 3
      %s77 = sand.u32 %s75, 7
      %s78 = smul.u32 %s76, 4
      %s79 = smul.addr %s78, 8
      %s80 = scalar_lea.vmem [#allocation7], %s79
      %v81 = vld [vmem:[%s80] sm:$0xff]
      %v82 = vld [vmem:[%s80 + $0x8] sm:$0xff]
      %v83 = vld [vmem:[%s80 + $0x10] sm:$0xff]
      %v84 = vld [vmem:[%s80 + $0x18] sm:$0xff]
      %v85 = vld [vmem:[%s80 + $0x20] sm:$0xff]
      %v86 = vld [vmem:[%s80 + $0x28] sm:$0xff]
      %v87 = vld [vmem:[%s80 + $0x30] sm:$0xff]
      %v88 = vld [vmem:[%s80 + $0x38] sm:$0xff]
      %v89 = vld [vmem:[%s80 + $0x40] sm:$0xff]
      %v90 = vld [vmem:[%s80 + $0x48] sm:$0xff]
      %v91 = vld [vmem:[%s80 + $0x50] sm:$0xff]
      %v92 = vld [vmem:[%s80 + $0x58] sm:$0xff]
      %v93 = vld [vmem:[%s80 + $0x60] sm:$0xff]
      %v94 = vld [vmem:[%s80 + $0x68] sm:$0xff]
      %v95 = vld [vmem:[%s80 + $0x70] sm:$0xff]
      %v96 = vld [vmem:[%s80 + $0x78] sm:$0xff]
      %v97 = vld [vmem:[%s80 + $0x80] sm:$0xff]
      %v98 = vld [vmem:[%s80 + $0x88] sm:$0xff]
      %v99 = vld [vmem:[%s80 + $0x90] sm:$0xff]
      %v100 = vld [vmem:[%s80 + $0x98] sm:$0xff]
      %v101 = vld [vmem:[%s80 + $0xa0] sm:$0xff]
      %v102 = vld [vmem:[%s80 + $0xa8] sm:$0xff]
      %v103 = vld [vmem:[%s80 + $0xb0] sm:$0xff]
      %v104 = vld [vmem:[%s80 + $0xb8] sm:$0xff]
      %v105 = vld [vmem:[%s80 + $0xc0] sm:$0xff]
      %v106 = vld [vmem:[%s80 + $0xc8] sm:$0xff]
      %v107 = vld [vmem:[%s80 + $0xd0] sm:$0xff]
      %v108 = vld [vmem:[%s80 + $0xd8] sm:$0xff]
      %v109 = vld [vmem:[%s80 + $0xe0] sm:$0xff]
      %v110 = vld [vmem:[%s80 + $0xe8] sm:$0xff]
      %v111 = vld [vmem:[%s80 + $0xf0] sm:$0xff]
      %v112 = vld [vmem:[%s80 + $0xf8] sm:$0xff]
      %v113 = vld [vmem:[%s80 + $0x100] sm:$0xff]
      %v114 = vld [vmem:[%s80 + $0x108] sm:$0xff]
      %v115 = vld [vmem:[%s80 + $0x110] sm:$0xff]
      %v116 = vld [vmem:[%s80 + $0x118] sm:$0xff]
      %v117 = vld [vmem:[%s80 + $0x120] sm:$0xff]
      %v118 = vld [vmem:[%s80 + $0x128] sm:$0xff]
      %v119 = vld [vmem:[%s80 + $0x130] sm:$0xff]
      %v120 = vld [vmem:[%s80 + $0x138] sm:$0xff]
      %v121 = vld [vmem:[%s80 + $0x140] sm:$0xff]
      %v122 = vld [vmem:[%s80 + $0x148] sm:$0xff]
      %v123 = vld [vmem:[%s80 + $0x150] sm:$0xff]
      %v124 = vld [vmem:[%s80 + $0x158] sm:$0xff]
      %v125 = vld [vmem:[%s80 + $0x160] sm:$0xff]
      %v126 = vld [vmem:[%s80 + $0x168] sm:$0xff]
      %v127 = vld [vmem:[%s80 + $0x170] sm:$0xff]
      %v128 = vld [vmem:[%s80 + $0x178] sm:$0xff]
      %v129 = vld [vmem:[%s80 + $0x180] sm:$0xff]
      %v130 = vld [vmem:[%s80 + $0x188] sm:$0xff]
      %v131 = vld [vmem:[%s80 + $0x190] sm:$0xff]
      %v132 = vld [vmem:[%s80 + $0x198] sm:$0xff]
      %v133 = vld [vmem:[%s80 + $0x1a0] sm:$0xff]
      %v134 = vld [vmem:[%s80 + $0x1a8] sm:$0xff]
      %v135 = vld [vmem:[%s80 + $0x1b0] sm:$0xff]
      %v136 = vld [vmem:[%s80 + $0x1b8] sm:$0xff]
      %v137 = vld [vmem:[%s80 + $0x1c0] sm:$0xff]
      %v138 = vld [vmem:[%s80 + $0x1c8] sm:$0xff]
      %v139 = vld [vmem:[%s80 + $0x1d0] sm:$0xff]
      %v140 = vld [vmem:[%s80 + $0x1d8] sm:$0xff]
      %v141 = vld [vmem:[%s80 + $0x1e0] sm:$0xff]
      %v142 = vld [vmem:[%s80 + $0x1e8] sm:$0xff]
      %v143 = vld [vmem:[%s80 + $0x1f0] sm:$0xff]
      %v144 = vld [vmem:[%s80 + $0x1f8] sm:$0xff]
      %v145 = vld [vmem:[%s80 + $0x200] sm:$0xff]
      %v146 = vld [vmem:[%s80 + $0x208] sm:$0xff]
      %v147 = vld [vmem:[%s80 + $0x210] sm:$0xff]
      %v148 = vld [vmem:[%s80 + $0x218] sm:$0xff]
      %v149 = vld [vmem:[%s80 + $0x220] sm:$0xff]
      %v150 = vld [vmem:[%s80 + $0x228] sm:$0xff]
      %v151 = vld [vmem:[%s80 + $0x230] sm:$0xff]
      %v152 = vld [vmem:[%s80 + $0x238] sm:$0xff]
      %v153 = vld [vmem:[%s80 + $0x240] sm:$0xff]
      %v154 = vld [vmem:[%s80 + $0x248] sm:$0xff]
      %v155 = vld [vmem:[%s80 + $0x250] sm:$0xff]
      %v156 = vld [vmem:[%s80 + $0x258] sm:$0xff]
      %v157 = vld [vmem:[%s80 + $0x260] sm:$0xff]
      %v158 = vld [vmem:[%s80 + $0x268] sm:$0xff]
      %v159 = vld [vmem:[%s80 + $0x270] sm:$0xff]
      %v160 = vld [vmem:[%s80 + $0x278] sm:$0xff]
      %v161 = vld [vmem:[%s80 + $0x280] sm:$0xff]
      %v162 = vld [vmem:[%s80 + $0x288] sm:$0xff]
      %v163 = vld [vmem:[%s80 + $0x290] sm:$0xff]
      %v164 = vld [vmem:[%s80 + $0x298] sm:$0xff]
      %v165 = vld [vmem:[%s80 + $0x2a0] sm:$0xff]
      %v166 = vld [vmem:[%s80 + $0x2a8] sm:$0xff]
      %v167 = vld [vmem:[%s80 + $0x2b0] sm:$0xff]
      %v168 = vld [vmem:[%s80 + $0x2b8] sm:$0xff]
      %v169 = vld [vmem:[%s80 + $0x2c0] sm:$0xff]
      %v170 = vld [vmem:[%s80 + $0x2c8] sm:$0xff]
      %v171 = vld [vmem:[%s80 + $0x2d0] sm:$0xff]
      %v172 = vld [vmem:[%s80 + $0x2d8] sm:$0xff]
      %v173 = vld [vmem:[%s80 + $0x2e0] sm:$0xff]
      %v174 = vld [vmem:[%s80 + $0x2e8] sm:$0xff]
      %v175 = vld [vmem:[%s80 + $0x2f0] sm:$0xff]
      %v176 = vld [vmem:[%s80 + $0x2f8] sm:$0xff]
      %v177 = vld [vmem:[%s80 + $0x300] sm:$0xff]
      %v178 = vld [vmem:[%s80 + $0x308] sm:$0xff]
      %v179 = vld [vmem:[%s80 + $0x310] sm:$0xff]
      %v180 = vld [vmem:[%s80 + $0x318] sm:$0xff]
      %v181 = vld [vmem:[%s80 + $0x320] sm:$0xff]
      %v182 = vld [vmem:[%s80 + $0x328] sm:$0xff]
      %v183 = vld [vmem:[%s80 + $0x330] sm:$0xff]
      %v184 = vld [vmem:[%s80 + $0x338] sm:$0xff]
      %v185 = vld [vmem:[%s80 + $0x340] sm:$0xff]
      %v186 = vld [vmem:[%s80 + $0x348] sm:$0xff]
      %v187 = vld [vmem:[%s80 + $0x350] sm:$0xff]
      %v188 = vld [vmem:[%s80 + $0x358] sm:$0xff]
      %v189 = vld [vmem:[%s80 + $0x360] sm:$0xff]
      %v190 = vld [vmem:[%s80 + $0x368] sm:$0xff]
      %v191 = vld [vmem:[%s80 + $0x370] sm:$0xff]
      %v192 = vld [vmem:[%s80 + $0x378] sm:$0xff]
      %v193 = vld [vmem:[%s80 + $0x380] sm:$0xff]
      %v194 = vld [vmem:[%s80 + $0x388] sm:$0xff]
      %v195 = vld [vmem:[%s80 + $0x390] sm:$0xff]
      %v196 = vld [vmem:[%s80 + $0x398] sm:$0xff]
      %v197 = vld [vmem:[%s80 + $0x3a0] sm:$0xff]
      %v198 = vld [vmem:[%s80 + $0x3a8] sm:$0xff]
      %v199 = vld [vmem:[%s80 + $0x3b0] sm:$0xff]
      %v200 = vld [vmem:[%s80 + $0x3b8] sm:$0xff]
      %v201 = vld [vmem:[%s80 + $0x3c0] sm:$0xff]
      %v202 = vld [vmem:[%s80 + $0x3c8] sm:$0xff]
      %v203 = vld [vmem:[%s80 + $0x3d0] sm:$0xff]
      %v204 = vld [vmem:[%s80 + $0x3d8] sm:$0xff]
      %v205 = vld [vmem:[%s80 + $0x3e0] sm:$0xff]
      %v206 = vld [vmem:[%s80 + $0x3e8] sm:$0xff]
      %v207 = vld [vmem:[%s80 + $0x3f0] sm:$0xff]
      %v208 = vld [vmem:[%s80 + $0x3f8] sm:$0xff]
      %v209 = vld [vmem:[%s80 + $0x400] sm:$0xff]
      %v210 = vld [vmem:[%s80 + $0x408] sm:$0xff]
      %v211 = vld [vmem:[%s80 + $0x410] sm:$0xff]
      %v212 = vld [vmem:[%s80 + $0x418] sm:$0xff]
      %v213 = vld [vmem:[%s80 + $0x420] sm:$0xff]
      %v214 = vld [vmem:[%s80 + $0x428] sm:$0xff]
      %v215 = vld [vmem:[%s80 + $0x430] sm:$0xff]
      %v216 = vld [vmem:[%s80 + $0x438] sm:$0xff]
      %v217 = vld [vmem:[%s80 + $0x440] sm:$0xff]
      %v218 = vld [vmem:[%s80 + $0x448] sm:$0xff]
      %v219 = vld [vmem:[%s80 + $0x450] sm:$0xff]
      %v220 = vld [vmem:[%s80 + $0x458] sm:$0xff]
      %v221 = vld [vmem:[%s80 + $0x460] sm:$0xff]
      %v222 = vld [vmem:[%s80 + $0x468] sm:$0xff]
      %v223 = vld [vmem:[%s80 + $0x470] sm:$0xff]
      %v224 = vld [vmem:[%s80 + $0x478] sm:$0xff]
      %v225 = vld [vmem:[%s80 + $0x480] sm:$0xff]
      %v226 = vld [vmem:[%s80 + $0x488] sm:$0xff]
      %v227 = vld [vmem:[%s80 + $0x490] sm:$0xff]
      %v228 = vld [vmem:[%s80 + $0x498] sm:$0xff]
      %v229 = vld [vmem:[%s80 + $0x4a0] sm:$0xff]
      %v230 = vld [vmem:[%s80 + $0x4a8] sm:$0xff]
      %v231 = vld [vmem:[%s80 + $0x4b0] sm:$0xff]
      %v232 = vld [vmem:[%s80 + $0x4b8] sm:$0xff]
      %v233 = vld [vmem:[%s80 + $0x4c0] sm:$0xff]
      %v234 = vld [vmem:[%s80 + $0x4c8] sm:$0xff]
      %v235 = vld [vmem:[%s80 + $0x4d0] sm:$0xff]
      %v236 = vld [vmem:[%s80 + $0x4d8] sm:$0xff]
      %v237 = vld [vmem:[%s80 + $0x4e0] sm:$0xff]
      %v238 = vld [vmem:[%s80 + $0x4e8] sm:$0xff]
      %v239 = vld [vmem:[%s80 + $0x4f0] sm:$0xff]
      %v240 = vld [vmem:[%s80 + $0x4f8] sm:$0xff]
      %v241 = vld [vmem:[%s80 + $0x500] sm:$0xff]
      %v242 = vld [vmem:[%s80 + $0x508] sm:$0xff]
      %v243 = vld [vmem:[%s80 + $0x510] sm:$0xff]
      %v244 = vld [vmem:[%s80 + $0x518] sm:$0xff]
      %v245 = vld [vmem:[%s80 + $0x520] sm:$0xff]
      %v246 = vld [vmem:[%s80 + $0x528] sm:$0xff]
      %v247 = vld [vmem:[%s80 + $0x530] sm:$0xff]
      %v248 = vld [vmem:[%s80 + $0x538] sm:$0xff]
      %v249 = vld [vmem:[%s80 + $0x540] sm:$0xff]
      %v250 = vld [vmem:[%s80 + $0x548] sm:$0xff]
      %v251 = vld [vmem:[%s80 + $0x550] sm:$0xff]
      %v252 = vld [vmem:[%s80 + $0x558] sm:$0xff]
      %v253 = vld [vmem:[%s80 + $0x560] sm:$0xff]
      %v254 = vld [vmem:[%s80 + $0x568] sm:$0xff]
      %v255 = vld [vmem:[%s80 + $0x570] sm:$0xff]
      %v256 = vld [vmem:[%s80 + $0x578] sm:$0xff]
      %v257 = vld [vmem:[%s80 + $0x580] sm:$0xff]
      %v258 = vld [vmem:[%s80 + $0x588] sm:$0xff]
      %v259 = vld [vmem:[%s80 + $0x590] sm:$0xff]
      %v260 = vld [vmem:[%s80 + $0x598] sm:$0xff]
      %v261 = vld [vmem:[%s80 + $0x5a0] sm:$0xff]
      %v262 = vld [vmem:[%s80 + $0x5a8] sm:$0xff]
      %v263 = vld [vmem:[%s80 + $0x5b0] sm:$0xff]
      %v264 = vld [vmem:[%s80 + $0x5b8] sm:$0xff]
      %v265 = vld [vmem:[%s80 + $0x5c0] sm:$0xff]
      %v266 = vld [vmem:[%s80 + $0x5c8] sm:$0xff]
      %v267 = vld [vmem:[%s80 + $0x5d0] sm:$0xff]
      %v268 = vld [vmem:[%s80 + $0x5d8] sm:$0xff]
      %v269 = vld [vmem:[%s80 + $0x5e0] sm:$0xff]
      %v270 = vld [vmem:[%s80 + $0x5e8] sm:$0xff]
      %v271 = vld [vmem:[%s80 + $0x5f0] sm:$0xff]
      %v272 = vld [vmem:[%s80 + $0x5f8] sm:$0xff]
      %v273 = vld [vmem:[%s80 + $0x600] sm:$0xff]
      %v274 = vld [vmem:[%s80 + $0x608] sm:$0xff]
      %v275 = vld [vmem:[%s80 + $0x610] sm:$0xff]
      %v276 = vld [vmem:[%s80 + $0x618] sm:$0xff]
      %v277 = vld [vmem:[%s80 + $0x620] sm:$0xff]
      %v278 = vld [vmem:[%s80 + $0x628] sm:$0xff]
      %v279 = vld [vmem:[%s80 + $0x630] sm:$0xff]
      %v280 = vld [vmem:[%s80 + $0x638] sm:$0xff]
      %v281 = vld [vmem:[%s80 + $0x640] sm:$0xff]
      %v282 = vld [vmem:[%s80 + $0x648] sm:$0xff]
      %v283 = vld [vmem:[%s80 + $0x650] sm:$0xff]
      %v284 = vld [vmem:[%s80 + $0x658] sm:$0xff]
      %v285 = vld [vmem:[%s80 + $0x660] sm:$0xff]
      %v286 = vld [vmem:[%s80 + $0x668] sm:$0xff]
      %v287 = vld [vmem:[%s80 + $0x670] sm:$0xff]
      %v288 = vld [vmem:[%s80 + $0x678] sm:$0xff]
      %v289 = vld [vmem:[%s80 + $0x680] sm:$0xff]
      %v290 = vld [vmem:[%s80 + $0x688] sm:$0xff]
      %v291 = vld [vmem:[%s80 + $0x690] sm:$0xff]
      %v292 = vld [vmem:[%s80 + $0x698] sm:$0xff]
      %v293 = vld [vmem:[%s80 + $0x6a0] sm:$0xff]
      %v294 = vld [vmem:[%s80 + $0x6a8] sm:$0xff]
      %v295 = vld [vmem:[%s80 + $0x6b0] sm:$0xff]
      %v296 = vld [vmem:[%s80 + $0x6b8] sm:$0xff]
      %v297 = vld [vmem:[%s80 + $0x6c0] sm:$0xff]
      %v298 = vld [vmem:[%s80 + $0x6c8] sm:$0xff]
      %v299 = vld [vmem:[%s80 + $0x6d0] sm:$0xff]
      %v300 = vld [vmem:[%s80 + $0x6d8] sm:$0xff]
      %v301 = vld [vmem:[%s80 + $0x6e0] sm:$0xff]
      %v302 = vld [vmem:[%s80 + $0x6e8] sm:$0xff]
      %v303 = vld [vmem:[%s80 + $0x6f0] sm:$0xff]
      %v304 = vld [vmem:[%s80 + $0x6f8] sm:$0xff]
      %v305 = vld [vmem:[%s80 + $0x700] sm:$0xff]
      %v306 = vld [vmem:[%s80 + $0x708] sm:$0xff]
      %v307 = vld [vmem:[%s80 + $0x710] sm:$0xff]
      %v308 = vld [vmem:[%s80 + $0x718] sm:$0xff]
      %v309 = vld [vmem:[%s80 + $0x720] sm:$0xff]
      %v310 = vld [vmem:[%s80 + $0x728] sm:$0xff]
      %v311 = vld [vmem:[%s80 + $0x730] sm:$0xff]
      %v312 = vld [vmem:[%s80 + $0x738] sm:$0xff]
      %v313 = vld [vmem:[%s80 + $0x740] sm:$0xff]
      %v314 = vld [vmem:[%s80 + $0x748] sm:$0xff]
      %v315 = vld [vmem:[%s80 + $0x750] sm:$0xff]
      %v316 = vld [vmem:[%s80 + $0x758] sm:$0xff]
      %v317 = vld [vmem:[%s80 + $0x760] sm:$0xff]
      %v318 = vld [vmem:[%s80 + $0x768] sm:$0xff]
      %v319 = vld [vmem:[%s80 + $0x770] sm:$0xff]
      %v320 = vld [vmem:[%s80 + $0x778] sm:$0xff]
      %v321 = vld [vmem:[%s80 + $0x780] sm:$0xff]
      %v322 = vld [vmem:[%s80 + $0x788] sm:$0xff]
      %v323 = vld [vmem:[%s80 + $0x790] sm:$0xff]
      %v324 = vld [vmem:[%s80 + $0x798] sm:$0xff]
      %v325 = vld [vmem:[%s80 + $0x7a0] sm:$0xff]
      %v326 = vld [vmem:[%s80 + $0x7a8] sm:$0xff]
      %v327 = vld [vmem:[%s80 + $0x7b0] sm:$0xff]
      %v328 = vld [vmem:[%s80 + $0x7b8] sm:$0xff]
      %v329 = vld [vmem:[%s80 + $0x7c0] sm:$0xff]
      %v330 = vld [vmem:[%s80 + $0x7c8] sm:$0xff]
      %v331 = vld [vmem:[%s80 + $0x7d0] sm:$0xff]
      %v332 = vld [vmem:[%s80 + $0x7d8] sm:$0xff]
      %v333 = vld [vmem:[%s80 + $0x7e0] sm:$0xff]
      %v334 = vld [vmem:[%s80 + $0x7e8] sm:$0xff]
      %v335 = vld [vmem:[%s80 + $0x7f0] sm:$0xff]
      %v336 = vld [vmem:[%s80 + $0x7f8] sm:$0xff]
      %v337 = vmul.f32 %v81, %v81
      %v338 = vmul.f32 %v82, %v82
      %v339 = vmul.f32 %v83, %v83
      %v340 = vmul.f32 %v84, %v84
      %v341 = vmul.f32 %v85, %v85
      %v342 = vmul.f32 %v86, %v86
      %v343 = vmul.f32 %v87, %v87
      %v344 = vmul.f32 %v88, %v88
      %v345 = vmul.f32 %v89, %v89
      %v346 = vmul.f32 %v90, %v90
      %v347 = vmul.f32 %v91, %v91
      %v348 = vmul.f32 %v92, %v92
      %v349 = vmul.f32 %v93, %v93
      %v350 = vmul.f32 %v94, %v94
      %v351 = vmul.f32 %v95, %v95
      %v352 = vmul.f32 %v96, %v96
      %v353 = vmul.f32 %v97, %v97
      %v354 = vmul.f32 %v98, %v98
      %v355 = vmul.f32 %v99, %v99
      %v356 = vmul.f32 %v100, %v100
      %v357 = vmul.f32 %v101, %v101
      %v358 = vmul.f32 %v102, %v102
      %v359 = vmul.f32 %v103, %v103
      %v360 = vmul.f32 %v104, %v104
      %v361 = vmul.f32 %v105, %v105
      %v362 = vmul.f32 %v106, %v106
      %v363 = vmul.f32 %v107, %v107
      %v364 = vmul.f32 %v108, %v108
      %v365 = vmul.f32 %v109, %v109
      %v366 = vmul.f32 %v110, %v110
      %v367 = vmul.f32 %v111, %v111
      %v368 = vmul.f32 %v112, %v112
      %v369 = vmul.f32 %v113, %v113
      %v370 = vmul.f32 %v114, %v114
      %v371 = vmul.f32 %v115, %v115
      %v372 = vmul.f32 %v116, %v116
      %v373 = vmul.f32 %v117, %v117
      %v374 = vmul.f32 %v118, %v118
      %v375 = vmul.f32 %v119, %v119
      %v376 = vmul.f32 %v120, %v120
      %v377 = vmul.f32 %v121, %v121
      %v378 = vmul.f32 %v122, %v122
      %v379 = vmul.f32 %v123, %v123
      %v380 = vmul.f32 %v124, %v124
      %v381 = vmul.f32 %v125, %v125
      %v382 = vmul.f32 %v126, %v126
      %v383 = vmul.f32 %v127, %v127
      %v384 = vmul.f32 %v128, %v128
      %v385 = vmul.f32 %v129, %v129
      %v386 = vmul.f32 %v130, %v130
      %v387 = vmul.f32 %v131, %v131
      %v388 = vmul.f32 %v132, %v132
      %v389 = vmul.f32 %v133, %v133
      %v390 = vmul.f32 %v134, %v134
      %v391 = vmul.f32 %v135, %v135
      %v392 = vmul.f32 %v136, %v136
      %v393 = vmul.f32 %v137, %v137
      %v394 = vmul.f32 %v138, %v138
      %v395 = vmul.f32 %v139, %v139
      %v396 = vmul.f32 %v140, %v140
      %v397 = vmul.f32 %v141, %v141
      %v398 = vmul.f32 %v142, %v142
      %v399 = vmul.f32 %v143, %v143
      %v400 = vmul.f32 %v144, %v144
      %v401 = vmul.f32 %v145, %v145
      %v402 = vmul.f32 %v146, %v146
      %v403 = vmul.f32 %v147, %v147
      %v404 = vmul.f32 %v148, %v148
      %v405 = vmul.f32 %v149, %v149
      %v406 = vmul.f32 %v150, %v150
      %v407 = vmul.f32 %v151, %v151
      %v408 = vmul.f32 %v152, %v152
      %v409 = vmul.f32 %v153, %v153
      %v410 = vmul.f32 %v154, %v154
      %v411 = vmul.f32 %v155, %v155
      %v412 = vmul.f32 %v156, %v156
      %v413 = vmul.f32 %v157, %v157
      %v414 = vmul.f32 %v158, %v158
      %v415 = vmul.f32 %v159, %v159
      %v416 = vmul.f32 %v160, %v160
      %v417 = vmul.f32 %v161, %v161
      %v418 = vmul.f32 %v162, %v162
      %v419 = vmul.f32 %v163, %v163
      %v420 = vmul.f32 %v164, %v164
      %v421 = vmul.f32 %v165, %v165
      %v422 = vmul.f32 %v166, %v166
      %v423 = vmul.f32 %v167, %v167
      %v424 = vmul.f32 %v168, %v168
      %v425 = vmul.f32 %v169, %v169
      %v426 = vmul.f32 %v170, %v170
      %v427 = vmul.f32 %v171, %v171
      %v428 = vmul.f32 %v172, %v172
      %v429 = vmul.f32 %v173, %v173
      %v430 = vmul.f32 %v174, %v174
      %v431 = vmul.f32 %v175, %v175
      %v432 = vmul.f32 %v176, %v176
      %v433 = vmul.f32 %v177, %v177
      %v434 = vmul.f32 %v178, %v178
      %v435 = vmul.f32 %v179, %v179
      %v436 = vmul.f32 %v180, %v180
      %v437 = vmul.f32 %v181, %v181
      %v438 = vmul.f32 %v182, %v182
      %v439 = vmul.f32 %v183, %v183
      %v440 = vmul.f32 %v184, %v184
      %v441 = vmul.f32 %v185, %v185
      %v442 = vmul.f32 %v186, %v186
      %v443 = vmul.f32 %v187, %v187
      %v444 = vmul.f32 %v188, %v188
      %v445 = vmul.f32 %v189, %v189
      %v446 = vmul.f32 %v190, %v190
      %v447 = vmul.f32 %v191, %v191
      %v448 = vmul.f32 %v192, %v192
      %v449 = vmul.f32 %v193, %v193
      %v450 = vmul.f32 %v194, %v194
      %v451 = vmul.f32 %v195, %v195
      %v452 = vmul.f32 %v196, %v196
      %v453 = vmul.f32 %v197, %v197
      %v454 = vmul.f32 %v198, %v198
      %v455 = vmul.f32 %v199, %v199
      %v456 = vmul.f32 %v200, %v200
      %v457 = vmul.f32 %v201, %v201
      %v458 = vmul.f32 %v202, %v202
      %v459 = vmul.f32 %v203, %v203
      %v460 = vmul.f32 %v204, %v204
      %v461 = vmul.f32 %v205, %v205
      %v462 = vmul.f32 %v206, %v206
      %v463 = vmul.f32 %v207, %v207
      %v464 = vmul.f32 %v208, %v208
      %v465 = vmul.f32 %v209, %v209
      %v466 = vmul.f32 %v210, %v210
      %v467 = vmul.f32 %v211, %v211
      %v468 = vmul.f32 %v212, %v212
      %v469 = vmul.f32 %v213, %v213
      %v470 = vmul.f32 %v214, %v214
      %v471 = vmul.f32 %v215, %v215
      %v472 = vmul.f32 %v216, %v216
      %v473 = vmul.f32 %v217, %v217
      %v474 = vmul.f32 %v218, %v218
      %v475 = vmul.f32 %v219, %v219
      %v476 = vmul.f32 %v220, %v220
      %v477 = vmul.f32 %v221, %v221
      %v478 = vmul.f32 %v222, %v222
      %v479 = vmul.f32 %v223, %v223
      %v480 = vmul.f32 %v224, %v224
      %v481 = vmul.f32 %v225, %v225
      %v482 = vmul.f32 %v226, %v226
      %v483 = vmul.f32 %v227, %v227
      %v484 = vmul.f32 %v228, %v228
      %v485 = vmul.f32 %v229, %v229
      %v486 = vmul.f32 %v230, %v230
      %v487 = vmul.f32 %v231, %v231
      %v488 = vmul.f32 %v232, %v232
      %v489 = vmul.f32 %v233, %v233
      %v490 = vmul.f32 %v234, %v234
      %v491 = vmul.f32 %v235, %v235
      %v492 = vmul.f32 %v236, %v236
      %v493 = vmul.f32 %v237, %v237
      %v494 = vmul.f32 %v238, %v238
      %v495 = vmul.f32 %v239, %v239
      %v496 = vmul.f32 %v240, %v240
      %v497 = vmul.f32 %v241, %v241
      %v498 = vmul.f32 %v242, %v242
      %v499 = vmul.f32 %v243, %v243
      %v500 = vmul.f32 %v244, %v244
      %v501 = vmul.f32 %v245, %v245
      %v502 = vmul.f32 %v246, %v246
      %v503 = vmul.f32 %v247, %v247
      %v504 = vmul.f32 %v248, %v248
      %v505 = vmul.f32 %v249, %v249
      %v506 = vmul.f32 %v250, %v250
      %v507 = vmul.f32 %v251, %v251
      %v508 = vmul.f32 %v252, %v252
      %v509 = vmul.f32 %v253, %v253
      %v510 = vmul.f32 %v254, %v254
      %v511 = vmul.f32 %v255, %v255
      %v512 = vmul.f32 %v256, %v256
      %v513 = vmul.f32 %v257, %v257
      %v514 = vmul.f32 %v258, %v258
      %v515 = vmul.f32 %v259, %v259
      %v516 = vmul.f32 %v260, %v260
      %v517 = vmul.f32 %v261, %v261
      %v518 = vmul.f32 %v262, %v262
      %v519 = vmul.f32 %v263, %v263
      %v520 = vmul.f32 %v264, %v264
      %v521 = vmul.f32 %v265, %v265
      %v522 = vmul.f32 %v266, %v266
      %v523 = vmul.f32 %v267, %v267
      %v524 = vmul.f32 %v268, %v268
      %v525 = vmul.f32 %v269, %v269
      %v526 = vmul.f32 %v270, %v270
      %v527 = vmul.f32 %v271, %v271
      %v528 = vmul.f32 %v272, %v272
      %v529 = vmul.f32 %v273, %v273
      %v530 = vmul.f32 %v274, %v274
      %v531 = vmul.f32 %v275, %v275
      %v532 = vmul.f32 %v276, %v276
      %v533 = vmul.f32 %v277, %v277
      %v534 = vmul.f32 %v278, %v278
      %v535 = vmul.f32 %v279, %v279
      %v536 = vmul.f32 %v280, %v280
      %v537 = vmul.f32 %v281, %v281
      %v538 = vmul.f32 %v282, %v282
      %v539 = vmul.f32 %v283, %v283
      %v540 = vmul.f32 %v284, %v284
      %v541 = vmul.f32 %v285, %v285
      %v542 = vmul.f32 %v286, %v286
      %v543 = vmul.f32 %v287, %v287
      %v544 = vmul.f32 %v288, %v288
      %v545 = vmul.f32 %v289, %v289
      %v546 = vmul.f32 %v290, %v290
      %v547 = vmul.f32 %v291, %v291
      %v548 = vmul.f32 %v292, %v292
      %v549 = vmul.f32 %v293, %v293
      %v550 = vmul.f32 %v294, %v294
      %v551 = vmul.f32 %v295, %v295
      %v552 = vmul.f32 %v296, %v296
      %v553 = vmul.f32 %v297, %v297
      %v554 = vmul.f32 %v298, %v298
      %v555 = vmul.f32 %v299, %v299
      %v556 = vmul.f32 %v300, %v300
      %v557 = vmul.f32 %v301, %v301
      %v558 = vmul.f32 %v302, %v302
      %v559 = vmul.f32 %v303, %v303
      %v560 = vmul.f32 %v304, %v304
      %v561 = vmul.f32 %v305, %v305
      %v562 = vmul.f32 %v306, %v306
      %v563 = vmul.f32 %v307, %v307
      %v564 = vmul.f32 %v308, %v308
      %v565 = vmul.f32 %v309, %v309
      %v566 = vmul.f32 %v310, %v310
      %v567 = vmul.f32 %v311, %v311
      %v568 = vmul.f32 %v312, %v312
      %v569 = vmul.f32 %v313, %v313
      %v570 = vmul.f32 %v314, %v314
      %v571 = vmul.f32 %v315, %v315
      %v572 = vmul.f32 %v316, %v316
      %v573 = vmul.f32 %v317, %v317
      %v574 = vmul.f32 %v318, %v318
      %v575 = vmul.f32 %v319, %v319
      %v576 = vmul.f32 %v320, %v320
      %v577 = vmul.f32 %v321, %v321
      %v578 = vmul.f32 %v322, %v322
      %v579 = vmul.f32 %v323, %v323
      %v580 = vmul.f32 %v324, %v324
      %v581 = vmul.f32 %v325, %v325
      %v582 = vmul.f32 %v326, %v326
      %v583 = vmul.f32 %v327, %v327
      %v584 = vmul.f32 %v328, %v328
      %v585 = vmul.f32 %v329, %v329
      %v586 = vmul.f32 %v330, %v330
      %v587 = vmul.f32 %v331, %v331
      %v588 = vmul.f32 %v332, %v332
      %v589 = vmul.f32 %v333, %v333
      %v590 = vmul.f32 %v334, %v334
      %v591 = vmul.f32 %v335, %v335
      %v592 = vmul.f32 %v336, %v336
      %v593 = vadd.f32 %v337, %v338
      %v594 = vadd.f32 %v593, %v339
      %v595 = vadd.f32 %v594, %v340
      %596 = vadd.xlane.f32.xlu0 %v595
      %v597 = vpop.xlane.xlu0 %596
      %v598 = vadd.f32 %v341, %v342
      %v599 = vadd.f32 %v598, %v343
      %v600 = vadd.f32 %v599, %v344
      %601 = vadd.xlane.f32.xlu0 %v600
      %v602 = vpop.xlane.xlu0 %601
      %v603 = vadd.f32 %v345, %v346
      %v604 = vadd.f32 %v603, %v347
      %v605 = vadd.f32 %v604, %v348
      %606 = vadd.xlane.f32.xlu0 %v605
      %v607 = vpop.xlane.xlu0 %606
      %v608 = vadd.f32 %v349, %v350
      %v609 = vadd.f32 %v608, %v351
      %v610 = vadd.f32 %v609, %v352
      %611 = vadd.xlane.f32.xlu0 %v610
      %v612 = vpop.xlane.xlu0 %611
      %v613 = vadd.f32 %v353, %v354
      %v614 = vadd.f32 %v613, %v355
      %v615 = vadd.f32 %v614, %v356
      %616 = vadd.xlane.f32.xlu0 %v615
      %v617 = vpop.xlane.xlu0 %616
      %v618 = vadd.f32 %v357, %v358
      %v619 = vadd.f32 %v618, %v359
      %v620 = vadd.f32 %v619, %v360
      %621 = vadd.xlane.f32.xlu0 %v620
      %v622 = vpop.xlane.xlu0 %621
      %v623 = vadd.f32 %v361, %v362
      %v624 = vadd.f32 %v623, %v363
      %v625 = vadd.f32 %v624, %v364
      %626 = vadd.xlane.f32.xlu0 %v625
      %v627 = vpop.xlane.xlu0 %626
      %v628 = vadd.f32 %v365, %v366
      %v629 = vadd.f32 %v628, %v367
      %v630 = vadd.f32 %v629, %v368
      %631 = vadd.xlane.f32.xlu0 %v630
      %v632 = vpop.xlane.xlu0 %631
      %v633 = vadd.f32 %v369, %v370
      %v634 = vadd.f32 %v633, %v371
      %v635 = vadd.f32 %v634, %v372
      %636 = vadd.xlane.f32.xlu0 %v635
      %v637 = vpop.xlane.xlu0 %636
      %v638 = vadd.f32 %v373, %v374
      %v639 = vadd.f32 %v638, %v375
      %v640 = vadd.f32 %v639, %v376
      %641 = vadd.xlane.f32.xlu0 %v640
      %v642 = vpop.xlane.xlu0 %641
      %v643 = vadd.f32 %v377, %v378
      %v644 = vadd.f32 %v643, %v379
      %v645 = vadd.f32 %v644, %v380
      %646 = vadd.xlane.f32.xlu0 %v645
      %v647 = vpop.xlane.xlu0 %646
      %v648 = vadd.f32 %v381, %v382
      %v649 = vadd.f32 %v648, %v383
      %v650 = vadd.f32 %v649, %v384
      %651 = vadd.xlane.f32.xlu0 %v650
      %v652 = vpop.xlane.xlu0 %651
      %v653 = vadd.f32 %v385, %v386
      %v654 = vadd.f32 %v653, %v387
      %v655 = vadd.f32 %v654, %v388
      %656 = vadd.xlane.f32.xlu0 %v655
      %v657 = vpop.xlane.xlu0 %656
      %v658 = vadd.f32 %v389, %v390
      %v659 = vadd.f32 %v658, %v391
      %v660 = vadd.f32 %v659, %v392
      %661 = vadd.xlane.f32.xlu0 %v660
      %v662 = vpop.xlane.xlu0 %661
      %v663 = vadd.f32 %v393, %v394
      %v664 = vadd.f32 %v663, %v395
      %v665 = vadd.f32 %v664, %v396
      %666 = vadd.xlane.f32.xlu0 %v665
      %v667 = vpop.xlane.xlu0 %666
      %v668 = vadd.f32 %v397, %v398
      %v669 = vadd.f32 %v668, %v399
      %v670 = vadd.f32 %v669, %v400
      %671 = vadd.xlane.f32.xlu0 %v670
      %v672 = vpop.xlane.xlu0 %671
      %v673 = vadd.f32 %v401, %v402
      %v674 = vadd.f32 %v673, %v403
      %v675 = vadd.f32 %v674, %v404
      %676 = vadd.xlane.f32.xlu0 %v675
      %v677 = vpop.xlane.xlu0 %676
      %v678 = vadd.f32 %v405, %v406
      %v679 = vadd.f32 %v678, %v407
      %v680 = vadd.f32 %v679, %v408
      %681 = vadd.xlane.f32.xlu0 %v680
      %v682 = vpop.xlane.xlu0 %681
      %v683 = vadd.f32 %v409, %v410
      %v684 = vadd.f32 %v683, %v411
      %v685 = vadd.f32 %v684, %v412
      %686 = vadd.xlane.f32.xlu0 %v685
      %v687 = vpop.xlane.xlu0 %686
      %v688 = vadd.f32 %v413, %v414
      %v689 = vadd.f32 %v688, %v415
      %v690 = vadd.f32 %v689, %v416
      %691 = vadd.xlane.f32.xlu0 %v690
      %v692 = vpop.xlane.xlu0 %691
      %v693 = vadd.f32 %v417, %v418
      %v694 = vadd.f32 %v693, %v419
      %v695 = vadd.f32 %v694, %v420
      %696 = vadd.xlane.f32.xlu0 %v695
      %v697 = vpop.xlane.xlu0 %696
      %v698 = vadd.f32 %v421, %v422
      %v699 = vadd.f32 %v698, %v423
      %v700 = vadd.f32 %v699, %v424
      %701 = vadd.xlane.f32.xlu0 %v700
      %v702 = vpop.xlane.xlu0 %701
      %v703 = vadd.f32 %v425, %v426
      %v704 = vadd.f32 %v703, %v427
      %v705 = vadd.f32 %v704, %v428
      %706 = vadd.xlane.f32.xlu0 %v705
      %v707 = vpop.xlane.xlu0 %706
      %v708 = vadd.f32 %v429, %v430
      %v709 = vadd.f32 %v708, %v431
      %v710 = vadd.f32 %v709, %v432
      %711 = vadd.xlane.f32.xlu0 %v710
      %v712 = vpop.xlane.xlu0 %711
      %v713 = vadd.f32 %v433, %v434
      %v714 = vadd.f32 %v713, %v435
      %v715 = vadd.f32 %v714, %v436
      %716 = vadd.xlane.f32.xlu0 %v715
      %v717 = vpop.xlane.xlu0 %716
      %v718 = vadd.f32 %v437, %v438
      %v719 = vadd.f32 %v718, %v439
      %v720 = vadd.f32 %v719, %v440
      %721 = vadd.xlane.f32.xlu0 %v720
      %v722 = vpop.xlane.xlu0 %721
      %v723 = vadd.f32 %v441, %v442
      %v724 = vadd.f32 %v723, %v443
      %v725 = vadd.f32 %v724, %v444
      %726 = vadd.xlane.f32.xlu0 %v725
      %v727 = vpop.xlane.xlu0 %726
      %v728 = vadd.f32 %v445, %v446
      %v729 = vadd.f32 %v728, %v447
      %v730 = vadd.f32 %v729, %v448
      %731 = vadd.xlane.f32.xlu0 %v730
      %v732 = vpop.xlane.xlu0 %731
      %v733 = vadd.f32 %v449, %v450
      %v734 = vadd.f32 %v733, %v451
      %v735 = vadd.f32 %v734, %v452
      %736 = vadd.xlane.f32.xlu0 %v735
      %v737 = vpop.xlane.xlu0 %736
      %v738 = vadd.f32 %v453, %v454
      %v739 = vadd.f32 %v738, %v455
      %v740 = vadd.f32 %v739, %v456
      %741 = vadd.xlane.f32.xlu0 %v740
      %v742 = vpop.xlane.xlu0 %741
      %v743 = vadd.f32 %v457, %v458
      %v744 = vadd.f32 %v743, %v459
      %v745 = vadd.f32 %v744, %v460
      %746 = vadd.xlane.f32.xlu0 %v745
      %v747 = vpop.xlane.xlu0 %746
      %v748 = vadd.f32 %v461, %v462
      %v749 = vadd.f32 %v748, %v463
      %v750 = vadd.f32 %v749, %v464
      %751 = vadd.xlane.f32.xlu0 %v750
      %v752 = vpop.xlane.xlu0 %751
      %v753 = vadd.f32 %v465, %v466
      %v754 = vadd.f32 %v753, %v467
      %v755 = vadd.f32 %v754, %v468
      %756 = vadd.xlane.f32.xlu0 %v755
      %v757 = vpop.xlane.xlu0 %756
      %v758 = vadd.f32 %v469, %v470
      %v759 = vadd.f32 %v758, %v471
      %v760 = vadd.f32 %v759, %v472
      %761 = vadd.xlane.f32.xlu0 %v760
      %v762 = vpop.xlane.xlu0 %761
      %v763 = vadd.f32 %v473, %v474
      %v764 = vadd.f32 %v763, %v475
      %v765 = vadd.f32 %v764, %v476
      %766 = vadd.xlane.f32.xlu0 %v765
      %v767 = vpop.xlane.xlu0 %766
      %v768 = vadd.f32 %v477, %v478
      %v769 = vadd.f32 %v768, %v479
      %v770 = vadd.f32 %v769, %v480
      %771 = vadd.xlane.f32.xlu0 %v770
      %v772 = vpop.xlane.xlu0 %771
      %v773 = vadd.f32 %v481, %v482
      %v774 = vadd.f32 %v773, %v483
      %v775 = vadd.f32 %v774, %v484
      %776 = vadd.xlane.f32.xlu0 %v775
      %v777 = vpop.xlane.xlu0 %776
      %v778 = vadd.f32 %v485, %v486
      %v779 = vadd.f32 %v778, %v487
      %v780 = vadd.f32 %v779, %v488
      %781 = vadd.xlane.f32.xlu0 %v780
      %v782 = vpop.xlane.xlu0 %781
      %v783 = vadd.f32 %v489, %v490
      %v784 = vadd.f32 %v783, %v491
      %v785 = vadd.f32 %v784, %v492
      %786 = vadd.xlane.f32.xlu0 %v785
      %v787 = vpop.xlane.xlu0 %786
      %v788 = vadd.f32 %v493, %v494
      %v789 = vadd.f32 %v788, %v495
      %v790 = vadd.f32 %v789, %v496
      %791 = vadd.xlane.f32.xlu0 %v790
      %v792 = vpop.xlane.xlu0 %791
      %v793 = vadd.f32 %v497, %v498
      %v794 = vadd.f32 %v793, %v499
      %v795 = vadd.f32 %v794, %v500
      %796 = vadd.xlane.f32.xlu0 %v795
      %v797 = vpop.xlane.xlu0 %796
      %v798 = vadd.f32 %v501, %v502
      %v799 = vadd.f32 %v798, %v503
      %v800 = vadd.f32 %v799, %v504
      %801 = vadd.xlane.f32.xlu0 %v800
      %v802 = vpop.xlane.xlu0 %801
      %v803 = vadd.f32 %v505, %v506
      %v804 = vadd.f32 %v803, %v507
      %v805 = vadd.f32 %v804, %v508
      %806 = vadd.xlane.f32.xlu0 %v805
      %v807 = vpop.xlane.xlu0 %806
      %v808 = vadd.f32 %v509, %v510
      %v809 = vadd.f32 %v808, %v511
      %v810 = vadd.f32 %v809, %v512
      %811 = vadd.xlane.f32.xlu0 %v810
      %v812 = vpop.xlane.xlu0 %811
      %v813 = vadd.f32 %v513, %v514
      %v814 = vadd.f32 %v813, %v515
      %v815 = vadd.f32 %v814, %v516
      %816 = vadd.xlane.f32.xlu0 %v815
      %v817 = vpop.xlane.xlu0 %816
      %v818 = vadd.f32 %v517, %v518
      %v819 = vadd.f32 %v818, %v519
      %v820 = vadd.f32 %v819, %v520
      %821 = vadd.xlane.f32.xlu0 %v820
      %v822 = vpop.xlane.xlu0 %821
      %v823 = vadd.f32 %v521, %v522
      %v824 = vadd.f32 %v823, %v523
      %v825 = vadd.f32 %v824, %v524
      %826 = vadd.xlane.f32.xlu0 %v825
      %v827 = vpop.xlane.xlu0 %826
      %v828 = vadd.f32 %v525, %v526
      %v829 = vadd.f32 %v828, %v527
      %v830 = vadd.f32 %v829, %v528
      %831 = vadd.xlane.f32.xlu0 %v830
      %v832 = vpop.xlane.xlu0 %831
      %v833 = vadd.f32 %v529, %v530
      %v834 = vadd.f32 %v833, %v531
      %v835 = vadd.f32 %v834, %v532
      %836 = vadd.xlane.f32.xlu0 %v835
      %v837 = vpop.xlane.xlu0 %836
      %v838 = vadd.f32 %v533, %v534
      %v839 = vadd.f32 %v838, %v535
      %v840 = vadd.f32 %v839, %v536
      %841 = vadd.xlane.f32.xlu0 %v840
      %v842 = vpop.xlane.xlu0 %841
      %v843 = vadd.f32 %v537, %v538
      %v844 = vadd.f32 %v843, %v539
      %v845 = vadd.f32 %v844, %v540
      %846 = vadd.xlane.f32.xlu0 %v845
      %v847 = vpop.xlane.xlu0 %846
      %v848 = vadd.f32 %v541, %v542
      %v849 = vadd.f32 %v848, %v543
      %v850 = vadd.f32 %v849, %v544
      %851 = vadd.xlane.f32.xlu0 %v850
      %v852 = vpop.xlane.xlu0 %851
      %v853 = vadd.f32 %v545, %v546
      %v854 = vadd.f32 %v853, %v547
      %v855 = vadd.f32 %v854, %v548
      %856 = vadd.xlane.f32.xlu0 %v855
      %v857 = vpop.xlane.xlu0 %856
      %v858 = vadd.f32 %v549, %v550
      %v859 = vadd.f32 %v858, %v551
      %v860 = vadd.f32 %v859, %v552
      %861 = vadd.xlane.f32.xlu0 %v860
      %v862 = vpop.xlane.xlu0 %861
      %v863 = vadd.f32 %v553, %v554
      %v864 = vadd.f32 %v863, %v555
      %v865 = vadd.f32 %v864, %v556
      %866 = vadd.xlane.f32.xlu0 %v865
      %v867 = vpop.xlane.xlu0 %866
      %v868 = vadd.f32 %v557, %v558
      %v869 = vadd.f32 %v868, %v559
      %v870 = vadd.f32 %v869, %v560
      %871 = vadd.xlane.f32.xlu0 %v870
      %v872 = vpop.xlane.xlu0 %871
      %v873 = vadd.f32 %v561, %v562
      %v874 = vadd.f32 %v873, %v563
      %v875 = vadd.f32 %v874, %v564
      %876 = vadd.xlane.f32.xlu0 %v875
      %v877 = vpop.xlane.xlu0 %876
      %v878 = vadd.f32 %v565, %v566
      %v879 = vadd.f32 %v878, %v567
      %v880 = vadd.f32 %v879, %v568
      %881 = vadd.xlane.f32.xlu0 %v880
      %v882 = vpop.xlane.xlu0 %881
      %v883 = vadd.f32 %v569, %v570
      %v884 = vadd.f32 %v883, %v571
      %v885 = vadd.f32 %v884, %v572
      %886 = vadd.xlane.f32.xlu0 %v885
      %v887 = vpop.xlane.xlu0 %886
      %v888 = vadd.f32 %v573, %v574
      %v889 = vadd.f32 %v888, %v575
      %v890 = vadd.f32 %v889, %v576
      %891 = vadd.xlane.f32.xlu0 %v890
      %v892 = vpop.xlane.xlu0 %891
      %v893 = vadd.f32 %v577, %v578
      %v894 = vadd.f32 %v893, %v579
      %v895 = vadd.f32 %v894, %v580
      %896 = vadd.xlane.f32.xlu0 %v895
      %v897 = vpop.xlane.xlu0 %896
      %v898 = vadd.f32 %v581, %v582
      %v899 = vadd.f32 %v898, %v583
      %v900 = vadd.f32 %v899, %v584
      %901 = vadd.xlane.f32.xlu0 %v900
      %v902 = vpop.xlane.xlu0 %901
      %v903 = vadd.f32 %v585, %v586
      %v904 = vadd.f32 %v903, %v587
      %v905 = vadd.f32 %v904, %v588
      %906 = vadd.xlane.f32.xlu0 %v905
      %v907 = vpop.xlane.xlu0 %906
      %v908 = vadd.f32 %v589, %v590
      %v909 = vadd.f32 %v908, %v591
      %v910 = vadd.f32 %v909, %v592
      %911 = vadd.xlane.f32.xlu0 %v910
      %v912 = vpop.xlane.xlu0 %911
      %v913 = vlaneseq
      %v914 = vshrl.u32 %v913, 7
      %v915 = vadd.s32 %v914, 8
      %v916 = vadd.s32 %v914, 16
      %v917 = vadd.s32 %v914, 24
      %v918 = vadd.s32 %v914, 32
      %v919 = vadd.s32 %v914, 40
      %v920 = vadd.s32 %v914, 48
      %v921 = vadd.s32 %v914, 56
      %v922 = vadd.s32 %v914, 64
      %v923 = vadd.s32 %v914, 72
      %v924 = vadd.s32 %v914, 80
      %v925 = vadd.s32 %v914, 88
      %v926 = vadd.s32 %v914, 96
      %v927 = vadd.s32 %v914, 104
      %v928 = vadd.s32 %v914, 112
      %v929 = vadd.s32 %v914, 120
      %v930 = vadd.s32 %v914, 128
      %v931 = vadd.s32 %v914, 136
      %v932 = vadd.s32 %v914, 144
      %v933 = vadd.s32 %v914, 152
      %v934 = vadd.s32 %v914, 160
      %v935 = vadd.s32 %v914, 168
      %v936 = vadd.s32 %v914, 176
      %v937 = vadd.s32 %v914, 184
      %v938 = vadd.s32 %v914, 192
      %v939 = vadd.s32 %v914, 200
      %v940 = vadd.s32 %v914, 208
      %v941 = vadd.s32 %v914, 216
      %v942 = vadd.s32 %v914, 224
      %v943 = vadd.s32 %v914, 232
      %v944 = vadd.s32 %v914, 240
      %v945 = vadd.s32 %v914, 248
      %v946 = vadd.s32 %v914, 256
      %v947 = vadd.s32 %v914, 264
      %v948 = vadd.s32 %v914, 272
      %v949 = vadd.s32 %v914, 280
      %v950 = vadd.s32 %v914, 288
      %v951 = vadd.s32 %v914, 296
      %v952 = vadd.s32 %v914, 304
      %v953 = vadd.s32 %v914, 312
      %v954 = vadd.s32 %v914, 320
      %v955 = vadd.s32 %v914, 328
      %v956 = vadd.s32 %v914, 336
      %v957 = vadd.s32 %v914, 344
      %v958 = vadd.s32 %v914, 352
      %v959 = vadd.s32 %v914, 360
      %v960 = vadd.s32 %v914, 368
      %v961 = vadd.s32 %v914, 376
      %v962 = vadd.s32 %v914, 384
      %v963 = vadd.s32 %v914, 392
      %v964 = vadd.s32 %v914, 400
      %v965 = vadd.s32 %v914, 408
      %v966 = vadd.s32 %v914, 416
      %v967 = vadd.s32 %v914, 424
      %v968 = vadd.s32 %v914, 432
      %v969 = vadd.s32 %v914, 440
      %v970 = vadd.s32 %v914, 448
      %v971 = vadd.s32 %v914, 456
      %v972 = vadd.s32 %v914, 464
      %v973 = vadd.s32 %v914, 472
      %v974 = vadd.s32 %v914, 480
      %v975 = vadd.s32 %v914, 488
      %v976 = vadd.s32 %v914, 496
      %v977 = vadd.s32 %v914, 504
      %s978 = sadd.s32 %s65, %s75
      %v979 = vstv %s978
      %v980 = vadd.s32 %v914, %v979
      %v981 = vadd.s32 %v915, %v979
      %v982 = vadd.s32 %v916, %v979
      %v983 = vadd.s32 %v917, %v979
      %v984 = vadd.s32 %v918, %v979
      %v985 = vadd.s32 %v919, %v979
      %v986 = vadd.s32 %v920, %v979
      %v987 = vadd.s32 %v921, %v979
      %v988 = vadd.s32 %v922, %v979
      %v989 = vadd.s32 %v923, %v979
      %v990 = vadd.s32 %v924, %v979
      %v991 = vadd.s32 %v925, %v979
      %v992 = vadd.s32 %v926, %v979
      %v993 = vadd.s32 %v927, %v979
      %v994 = vadd.s32 %v928, %v979
      %v995 = vadd.s32 %v929, %v979
      %v996 = vadd.s32 %v930, %v979
      %v997 = vadd.s32 %v931, %v979
      %v998 = vadd.s32 %v932, %v979
      %v999 = vadd.s32 %v933, %v979
      %v1000 = vadd.s32 %v934, %v979
      %v1001 = vadd.s32 %v935, %v979
      %v1002 = vadd.s32 %v936, %v979
      %v1003 = vadd.s32 %v937, %v979
      %v1004 = vadd.s32 %v938, %v979
      %v1005 = vadd.s32 %v939, %v979
      %v1006 = vadd.s32 %v940, %v979
      %v1007 = vadd.s32 %v941, %v979
      %v1008 = vadd.s32 %v942, %v979
      %v1009 = vadd.s32 %v943, %v979
      %v1010 = vadd.s32 %v944, %v979
      %v1011 = vadd.s32 %v945, %v979
      %v1012 = vadd.s32 %v946, %v979
      %v1013 = vadd.s32 %v947, %v979
      %v1014 = vadd.s32 %v948, %v979
      %v1015 = vadd.s32 %v949, %v979
      %v1016 = vadd.s32 %v950, %v979
      %v1017 = vadd.s32 %v951, %v979
      %v1018 = vadd.s32 %v952, %v979
      %v1019 = vadd.s32 %v953, %v979
      %v1020 = vadd.s32 %v954, %v979
      %v1021 = vadd.s32 %v955, %v979
      %v1022 = vadd.s32 %v956, %v979
      %v1023 = vadd.s32 %v957, %v979
      %v1024 = vadd.s32 %v958, %v979
      %v1025 = vadd.s32 %v959, %v979
      %v1026 = vadd.s32 %v960, %v979
      %v1027 = vadd.s32 %v961, %v979
      %v1028 = vadd.s32 %v962, %v979
      %v1029 = vadd.s32 %v963, %v979
      %v1030 = vadd.s32 %v964, %v979
      %v1031 = vadd.s32 %v965, %v979
      %v1032 = vadd.s32 %v966, %v979
      %v1033 = vadd.s32 %v967, %v979
      %v1034 = vadd.s32 %v968, %v979
      %v1035 = vadd.s32 %v969, %v979
      %v1036 = vadd.s32 %v970, %v979
      %v1037 = vadd.s32 %v971, %v979
      %v1038 = vadd.s32 %v972, %v979
      %v1039 = vadd.s32 %v973, %v979
      %v1040 = vadd.s32 %v974, %v979
      %v1041 = vadd.s32 %v975, %v979
      %v1042 = vadd.s32 %v976, %v979
      %v1043 = vadd.s32 %v977, %v979
      %v1044 = vlaneseq
      %v1045 = vshrl.u32 %v1044, 7
      %v1046 = vsub.s32 0, %v1045
      %v1047 = vrot.slane %v66, %v1046
      %vm1048 = vcmp.ge.s32.totalorder %v980, %v1047
      %vm1049 = vcmp.ge.s32.totalorder %v981, %v1047
      %vm1050 = vcmp.ge.s32.totalorder %v982, %v1047
      %vm1051 = vcmp.ge.s32.totalorder %v983, %v1047
      %vm1052 = vcmp.ge.s32.totalorder %v984, %v1047
      %vm1053 = vcmp.ge.s32.totalorder %v985, %v1047
      %vm1054 = vcmp.ge.s32.totalorder %v986, %v1047
      %vm1055 = vcmp.ge.s32.totalorder %v987, %v1047
      %vm1056 = vcmp.ge.s32.totalorder %v988, %v1047
      %vm1057 = vcmp.ge.s32.totalorder %v989, %v1047
      %vm1058 = vcmp.ge.s32.totalorder %v990, %v1047
      %vm1059 = vcmp.ge.s32.totalorder %v991, %v1047
      %vm1060 = vcmp.ge.s32.totalorder %v992, %v1047
      %vm1061 = vcmp.ge.s32.totalorder %v993, %v1047
      %vm1062 = vcmp.ge.s32.totalorder %v994, %v1047
      %vm1063 = vcmp.ge.s32.totalorder %v995, %v1047
      %vm1064 = vcmp.ge.s32.totalorder %v996, %v1047
      %vm1065 = vcmp.ge.s32.totalorder %v997, %v1047
      %vm1066 = vcmp.ge.s32.totalorder %v998, %v1047
      %vm1067 = vcmp.ge.s32.totalorder %v999, %v1047
      %vm1068 = vcmp.ge.s32.totalorder %v1000, %v1047
      %vm1069 = vcmp.ge.s32.totalorder %v1001, %v1047
      %vm1070 = vcmp.ge.s32.totalorder %v1002, %v1047
      %vm1071 = vcmp.ge.s32.totalorder %v1003, %v1047
      %vm1072 = vcmp.ge.s32.totalorder %v1004, %v1047
      %vm1073 = vcmp.ge.s32.totalorder %v1005, %v1047
      %vm1074 = vcmp.ge.s32.totalorder %v1006, %v1047
      %vm1075 = vcmp.ge.s32.totalorder %v1007, %v1047
      %vm1076 = vcmp.ge.s32.totalorder %v1008, %v1047
      %vm1077 = vcmp.ge.s32.totalorder %v1009, %v1047
      %vm1078 = vcmp.ge.s32.totalorder %v1010, %v1047
      %vm1079 = vcmp.ge.s32.totalorder %v1011, %v1047
      %vm1080 = vcmp.ge.s32.totalorder %v1012, %v1047
      %vm1081 = vcmp.ge.s32.totalorder %v1013, %v1047
      %vm1082 = vcmp.ge.s32.totalorder %v1014, %v1047
      %vm1083 = vcmp.ge.s32.totalorder %v1015, %v1047
      %vm1084 = vcmp.ge.s32.totalorder %v1016, %v1047
      %vm1085 = vcmp.ge.s32.totalorder %v1017, %v1047
      %vm1086 = vcmp.ge.s32.totalorder %v1018, %v1047
      %vm1087 = vcmp.ge.s32.totalorder %v1019, %v1047
      %vm1088 = vcmp.ge.s32.totalorder %v1020, %v1047
      %vm1089 = vcmp.ge.s32.totalorder %v1021, %v1047
      %vm1090 = vcmp.ge.s32.totalorder %v1022, %v1047
      %vm1091 = vcmp.ge.s32.totalorder %v1023, %v1047
      %vm1092 = vcmp.ge.s32.totalorder %v1024, %v1047
      %vm1093 = vcmp.ge.s32.totalorder %v1025, %v1047
      %vm1094 = vcmp.ge.s32.totalorder %v1026, %v1047
      %vm1095 = vcmp.ge.s32.totalorder %v1027, %v1047
      %vm1096 = vcmp.ge.s32.totalorder %v1028, %v1047
      %vm1097 = vcmp.ge.s32.totalorder %v1029, %v1047
      %vm1098 = vcmp.ge.s32.totalorder %v1030, %v1047
      %vm1099 = vcmp.ge.s32.totalorder %v1031, %v1047
      %vm1100 = vcmp.ge.s32.totalorder %v1032, %v1047
      %vm1101 = vcmp.ge.s32.totalorder %v1033, %v1047
      %vm1102 = vcmp.ge.s32.totalorder %v1034, %v1047
      %vm1103 = vcmp.ge.s32.totalorder %v1035, %v1047
      %vm1104 = vcmp.ge.s32.totalorder %v1036, %v1047
      %vm1105 = vcmp.ge.s32.totalorder %v1037, %v1047
      %vm1106 = vcmp.ge.s32.totalorder %v1038, %v1047
      %vm1107 = vcmp.ge.s32.totalorder %v1039, %v1047
      %vm1108 = vcmp.ge.s32.totalorder %v1040, %v1047
      %vm1109 = vcmp.ge.s32.totalorder %v1041, %v1047
      %vm1110 = vcmp.ge.s32.totalorder %v1042, %v1047
      %vm1111 = vcmp.ge.s32.totalorder %v1043, %v1047
      %v1112 = vlaneseq
      %v1113 = vshrl.u32 %v1112, 7
      %v1114 = vsub.s32 0, %v1113
      %v1115 = vrot.slane %v67, %v1114
      %vm1116 = vcmp.lt.s32.totalorder %v980, %v1115
      %vm1117 = vcmp.lt.s32.totalorder %v981, %v1115
      %vm1118 = vcmp.lt.s32.totalorder %v982, %v1115
      %vm1119 = vcmp.lt.s32.totalorder %v983, %v1115
      %vm1120 = vcmp.lt.s32.totalorder %v984, %v1115
      %vm1121 = vcmp.lt.s32.totalorder %v985, %v1115
      %vm1122 = vcmp.lt.s32.totalorder %v986, %v1115
      %vm1123 = vcmp.lt.s32.totalorder %v987, %v1115
      %vm1124 = vcmp.lt.s32.totalorder %v988, %v1115
      %vm1125 = vcmp.lt.s32.totalorder %v989, %v1115
      %vm1126 = vcmp.lt.s32.totalorder %v990, %v1115
      %vm1127 = vcmp.lt.s32.totalorder %v991, %v1115
      %vm1128 = vcmp.lt.s32.totalorder %v992, %v1115
      %vm1129 = vcmp.lt.s32.totalorder %v993, %v1115
      %vm1130 = vcmp.lt.s32.totalorder %v994, %v1115
      %vm1131 = vcmp.lt.s32.totalorder %v995, %v1115
      %vm1132 = vcmp.lt.s32.totalorder %v996, %v1115
      %vm1133 = vcmp.lt.s32.totalorder %v997, %v1115
      %vm1134 = vcmp.lt.s32.totalorder %v998, %v1115
      %vm1135 = vcmp.lt.s32.totalorder %v999, %v1115
      %vm1136 = vcmp.lt.s32.totalorder %v1000, %v1115
      %vm1137 = vcmp.lt.s32.totalorder %v1001, %v1115
      %vm1138 = vcmp.lt.s32.totalorder %v1002, %v1115
      %vm1139 = vcmp.lt.s32.totalorder %v1003, %v1115
      %vm1140 = vcmp.lt.s32.totalorder %v1004, %v1115
      %vm1141 = vcmp.lt.s32.totalorder %v1005, %v1115
      %vm1142 = vcmp.lt.s32.totalorder %v1006, %v1115
      %vm1143 = vcmp.lt.s32.totalorder %v1007, %v1115
      %vm1144 = vcmp.lt.s32.totalorder %v1008, %v1115
      %vm1145 = vcmp.lt.s32.totalorder %v1009, %v1115
      %vm1146 = vcmp.lt.s32.totalorder %v1010, %v1115
      %vm1147 = vcmp.lt.s32.totalorder %v1011, %v1115
      %vm1148 = vcmp.lt.s32.totalorder %v1012, %v1115
      %vm1149 = vcmp.lt.s32.totalorder %v1013, %v1115
      %vm1150 = vcmp.lt.s32.totalorder %v1014, %v1115
      %vm1151 = vcmp.lt.s32.totalorder %v1015, %v1115
      %vm1152 = vcmp.lt.s32.totalorder %v1016, %v1115
      %vm1153 = vcmp.lt.s32.totalorder %v1017, %v1115
      %vm1154 = vcmp.lt.s32.totalorder %v1018, %v1115
      %vm1155 = vcmp.lt.s32.totalorder %v1019, %v1115
      %vm1156 = vcmp.lt.s32.totalorder %v1020, %v1115
      %vm1157 = vcmp.lt.s32.totalorder %v1021, %v1115
      %vm1158 = vcmp.lt.s32.totalorder %v1022, %v1115
      %vm1159 = vcmp.lt.s32.totalorder %v1023, %v1115
      %vm1160 = vcmp.lt.s32.totalorder %v1024, %v1115
      %vm1161 = vcmp.lt.s32.totalorder %v1025, %v1115
      %vm1162 = vcmp.lt.s32.totalorder %v1026, %v1115
      %vm1163 = vcmp.lt.s32.totalorder %v1027, %v1115
      %vm1164 = vcmp.lt.s32.totalorder %v1028, %v1115
      %vm1165 = vcmp.lt.s32.totalorder %v1029, %v1115
      %vm1166 = vcmp.lt.s32.totalorder %v1030, %v1115
      %vm1167 = vcmp.lt.s32.totalorder %v1031, %v1115
      %vm1168 = vcmp.lt.s32.totalorder %v1032, %v1115
      %vm1169 = vcmp.lt.s32.totalorder %v1033, %v1115
      %vm1170 = vcmp.lt.s32.totalorder %v1034, %v1115
      %vm1171 = vcmp.lt.s32.totalorder %v1035, %v1115
      %vm1172 = vcmp.lt.s32.totalorder %v1036, %v1115
      %vm1173 = vcmp.lt.s32.totalorder %v1037, %v1115
      %vm1174 = vcmp.lt.s32.totalorder %v1038, %v1115
      %vm1175 = vcmp.lt.s32.totalorder %v1039, %v1115
      %vm1176 = vcmp.lt.s32.totalorder %v1040, %v1115
      %vm1177 = vcmp.lt.s32.totalorder %v1041, %v1115
      %vm1178 = vcmp.lt.s32.totalorder %v1042, %v1115
      %vm1179 = vcmp.lt.s32.totalorder %v1043, %v1115
      %vm1180 = vmand %vm1048, %vm1116
      %vm1181 = vmand %vm1049, %vm1117
      %vm1182 = vmand %vm1050, %vm1118
      %vm1183 = vmand %vm1051, %vm1119
      %vm1184 = vmand %vm1052, %vm1120
      %vm1185 = vmand %vm1053, %vm1121
      %vm1186 = vmand %vm1054, %vm1122
      %vm1187 = vmand %vm1055, %vm1123
      %vm1188 = vmand %vm1056, %vm1124
      %vm1189 = vmand %vm1057, %vm1125
      %vm1190 = vmand %vm1058, %vm1126
      %vm1191 = vmand %vm1059, %vm1127
      %vm1192 = vmand %vm1060, %vm1128
      %vm1193 = vmand %vm1061, %vm1129
      %vm1194 = vmand %vm1062, %vm1130
      %vm1195 = vmand %vm1063, %vm1131
      %vm1196 = vmand %vm1064, %vm1132
      %vm1197 = vmand %vm1065, %vm1133
      %vm1198 = vmand %vm1066, %vm1134
      %vm1199 = vmand %vm1067, %vm1135
      %vm1200 = vmand %vm1068, %vm1136
      %vm1201 = vmand %vm1069, %vm1137
      %vm1202 = vmand %vm1070, %vm1138
      %vm1203 = vmand %vm1071, %vm1139
      %vm1204 = vmand %vm1072, %vm1140
      %vm1205 = vmand %vm1073, %vm1141
      %vm1206 = vmand %vm1074, %vm1142
      %vm1207 = vmand %vm1075, %vm1143
      %vm1208 = vmand %vm1076, %vm1144
      %vm1209 = vmand %vm1077, %vm1145
      %vm1210 = vmand %vm1078, %vm1146
      %vm1211 = vmand %vm1079, %vm1147
      %vm1212 = vmand %vm1080, %vm1148
      %vm1213 = vmand %vm1081, %vm1149
      %vm1214 = vmand %vm1082, %vm1150
      %vm1215 = vmand %vm1083, %vm1151
      %vm1216 = vmand %vm1084, %vm1152
      %vm1217 = vmand %vm1085, %vm1153
      %vm1218 = vmand %vm1086, %vm1154
      %vm1219 = vmand %vm1087, %vm1155
      %vm1220 = vmand %vm1088, %vm1156
      %vm1221 = vmand %vm1089, %vm1157
      %vm1222 = vmand %vm1090, %vm1158
      %vm1223 = vmand %vm1091, %vm1159
      %vm1224 = vmand %vm1092, %vm1160
      %vm1225 = vmand %vm1093, %vm1161
      %vm1226 = vmand %vm1094, %vm1162
      %vm1227 = vmand %vm1095, %vm1163
      %vm1228 = vmand %vm1096, %vm1164
      %vm1229 = vmand %vm1097, %vm1165
      %vm1230 = vmand %vm1098, %vm1166
      %vm1231 = vmand %vm1099, %vm1167
      %vm1232 = vmand %vm1100, %vm1168
      %vm1233 = vmand %vm1101, %vm1169
      %vm1234 = vmand %vm1102, %vm1170
      %vm1235 = vmand %vm1103, %vm1171
      %vm1236 = vmand %vm1104, %vm1172
      %vm1237 = vmand %vm1105, %vm1173
      %vm1238 = vmand %vm1106, %vm1174
      %vm1239 = vmand %vm1107, %vm1175
      %vm1240 = vmand %vm1108, %vm1176
      %vm1241 = vmand %vm1109, %vm1177
      %vm1242 = vmand %vm1110, %vm1178
      %vm1243 = vmand %vm1111, %vm1179
      %v1244 = vsel %vm1180, %v597, 0.0
      %v1245 = vsel %vm1181, %v602, 0.0
      %v1246 = vsel %vm1182, %v607, 0.0
      %v1247 = vsel %vm1183, %v612, 0.0
      %v1248 = vsel %vm1184, %v617, 0.0
      %v1249 = vsel %vm1185, %v622, 0.0
      %v1250 = vsel %vm1186, %v627, 0.0
      %v1251 = vsel %vm1187, %v632, 0.0
      %v1252 = vsel %vm1188, %v637, 0.0
      %v1253 = vsel %vm1189, %v642, 0.0
      %v1254 = vsel %vm1190, %v647, 0.0
      %v1255 = vsel %vm1191, %v652, 0.0
      %v1256 = vsel %vm1192, %v657, 0.0
      %v1257 = vsel %vm1193, %v662, 0.0
      %v1258 = vsel %vm1194, %v667, 0.0
      %v1259 = vsel %vm1195, %v672, 0.0
      %v1260 = vsel %vm1196, %v677, 0.0
      %v1261 = vsel %vm1197, %v682, 0.0
      %v1262 = vsel %vm1198, %v687, 0.0
      %v1263 = vsel %vm1199, %v692, 0.0
      %v1264 = vsel %vm1200, %v697, 0.0
      %v1265 = vsel %vm1201, %v702, 0.0
      %v1266 = vsel %vm1202, %v707, 0.0
      %v1267 = vsel %vm1203, %v712, 0.0
      %v1268 = vsel %vm1204, %v717, 0.0
      %v1269 = vsel %vm1205, %v722, 0.0
      %v1270 = vsel %vm1206, %v727, 0.0
      %v1271 = vsel %vm1207, %v732, 0.0
      %v1272 = vsel %vm1208, %v737, 0.0
      %v1273 = vsel %vm1209, %v742, 0.0
      %v1274 = vsel %vm1210, %v747, 0.0
      %v1275 = vsel %vm1211, %v752, 0.0
      %v1276 = vsel %vm1212, %v757, 0.0
      %v1277 = vsel %vm1213, %v762, 0.0
      %v1278 = vsel %vm1214, %v767, 0.0
      %v1279 = vsel %vm1215, %v772, 0.0
      %v1280 = vsel %vm1216, %v777, 0.0
      %v1281 = vsel %vm1217, %v782, 0.0
      %v1282 = vsel %vm1218, %v787, 0.0
      %v1283 = vsel %vm1219, %v792, 0.0
      %v1284 = vsel %vm1220, %v797, 0.0
      %v1285 = vsel %vm1221, %v802, 0.0
      %v1286 = vsel %vm1222, %v807, 0.0
      %v1287 = vsel %vm1223, %v812, 0.0
      %v1288 = vsel %vm1224, %v817, 0.0
      %v1289 = vsel %vm1225, %v822, 0.0
      %v1290 = vsel %vm1226, %v827, 0.0
      %v1291 = vsel %vm1227, %v832, 0.0
      %v1292 = vsel %vm1228, %v837, 0.0
      %v1293 = vsel %vm1229, %v842, 0.0
      %v1294 = vsel %vm1230, %v847, 0.0
      %v1295 = vsel %vm1231, %v852, 0.0
      %v1296 = vsel %vm1232, %v857, 0.0
      %v1297 = vsel %vm1233, %v862, 0.0
      %v1298 = vsel %vm1234, %v867, 0.0
      %v1299 = vsel %vm1235, %v872, 0.0
      %v1300 = vsel %vm1236, %v877, 0.0
      %v1301 = vsel %vm1237, %v882, 0.0
      %v1302 = vsel %vm1238, %v887, 0.0
      %v1303 = vsel %vm1239, %v892, 0.0
      %v1304 = vsel %vm1240, %v897, 0.0
      %v1305 = vsel %vm1241, %v902, 0.0
      %v1306 = vsel %vm1242, %v907, 0.0
      %v1307 = vsel %vm1243, %v912, 0.0
      %v1308 = vadd.f32 %v1244, %v1245
      %v1309 = vadd.f32 %v1308, %v1246
      %v1310 = vadd.f32 %v1309, %v1247
      %v1311 = vadd.f32 %v1310, %v1248
      %v1312 = vadd.f32 %v1311, %v1249
      %v1313 = vadd.f32 %v1312, %v1250
      %v1314 = vadd.f32 %v1313, %v1251
      %v1315 = vadd.f32 %v1314, %v1252
      %v1316 = vadd.f32 %v1315, %v1253
      %v1317 = vadd.f32 %v1316, %v1254
      %v1318 = vadd.f32 %v1317, %v1255
      %v1319 = vadd.f32 %v1318, %v1256
      %v1320 = vadd.f32 %v1319, %v1257
      %v1321 = vadd.f32 %v1320, %v1258
      %v1322 = vadd.f32 %v1321, %v1259
      %v1323 = vadd.f32 %v1322, %v1260
      %v1324 = vadd.f32 %v1323, %v1261
      %v1325 = vadd.f32 %v1324, %v1262
      %v1326 = vadd.f32 %v1325, %v1263
      %v1327 = vadd.f32 %v1326, %v1264
      %v1328 = vadd.f32 %v1327, %v1265
      %v1329 = vadd.f32 %v1328, %v1266
      %v1330 = vadd.f32 %v1329, %v1267
      %v1331 = vadd.f32 %v1330, %v1268
      %v1332 = vadd.f32 %v1331, %v1269
      %v1333 = vadd.f32 %v1332, %v1270
      %v1334 = vadd.f32 %v1333, %v1271
      %v1335 = vadd.f32 %v1334, %v1272
      %v1336 = vadd.f32 %v1335, %v1273
      %v1337 = vadd.f32 %v1336, %v1274
      %v1338 = vadd.f32 %v1337, %v1275
      %v1339 = vadd.f32 %v1338, %v1276
      %v1340 = vadd.f32 %v1339, %v1277
      %v1341 = vadd.f32 %v1340, %v1278
      %v1342 = vadd.f32 %v1341, %v1279
      %v1343 = vadd.f32 %v1342, %v1280
      %v1344 = vadd.f32 %v1343, %v1281
      %v1345 = vadd.f32 %v1344, %v1282
      %v1346 = vadd.f32 %v1345, %v1283
      %v1347 = vadd.f32 %v1346, %v1284
      %v1348 = vadd.f32 %v1347, %v1285
      %v1349 = vadd.f32 %v1348, %v1286
      %v1350 = vadd.f32 %v1349, %v1287
      %v1351 = vadd.f32 %v1350, %v1288
      %v1352 = vadd.f32 %v1351, %v1289
      %v1353 = vadd.f32 %v1352, %v1290
      %v1354 = vadd.f32 %v1353, %v1291
      %v1355 = vadd.f32 %v1354, %v1292
      %v1356 = vadd.f32 %v1355, %v1293
      %v1357 = vadd.f32 %v1356, %v1294
      %v1358 = vadd.f32 %v1357, %v1295
      %v1359 = vadd.f32 %v1358, %v1296
      %v1360 = vadd.f32 %v1359, %v1297
      %v1361 = vadd.f32 %v1360, %v1298
      %v1362 = vadd.f32 %v1361, %v1299
      %v1363 = vadd.f32 %v1362, %v1300
      %v1364 = vadd.f32 %v1363, %v1301
      %v1365 = vadd.f32 %v1364, %v1302
      %v1366 = vadd.f32 %v1365, %v1303
      %v1367 = vadd.f32 %v1366, %v1304
      %v1368 = vadd.f32 %v1367, %v1305
      %v1369 = vadd.f32 %v1368, %v1306
      %v1370 = vadd.f32 %v1369, %v1307
      %v1371 = vadd.f32 %v74, %v1370
    $region34: #{tpu_custom_call.1} parent=1 // loop_footer
      %s73 = sadd.s32 1, %s69
    $region35: #{tpu_custom_call.1} parent=1 // loop_footer_branch
      %68 = sbr.rel target = $region31
    $region36: #{tpu_custom_call.1} parent=1 // loop_exit
      _
    %v1372 = vld [vmem:[#allocation8] sm:$0xff]
    %v1373 = vadd.f32 %v1372, %v74
    %1374 = vst [vmem:[#allocation8] sm:$0xff] %v1373
    // Predicated region
    $region37: #{tpu_custom_call.1} parent=1 // pred_check
      _
    $region38: #{tpu_custom_call.1} parent=1 // pred_check_branch
      %1376 = sbr.rel (0) target = $region40
    $region39: #{tpu_custom_call.1} parent=1 // pred_region
      %s1378 = ssub.s32 128, 128
      %1379 = vsyncadd [#allocation4], %s1378
      %s1381 = sshll.u32 [#allocation8], 4
      %s1382 = int_to_ptr.vmem [resolvable:$true] %s1381
      %1384 = dma.vmem_to_hbm [thread:$0]  %s1382, 128, %s3, [#allocation4]
    $region40: #{tpu_custom_call.1} parent=1 // pred_fallthru
      _
    // Predicated region
    $region41: #{tpu_custom_call.1} parent=1 // pred_check
      _
    $region42: #{tpu_custom_call.1} parent=1 // pred_check_branch
      %1386 = sbr.rel (0) target = $region44
    $region43: #{tpu_custom_call.1} parent=1 // pred_region
      %1387 = dma.done [#allocation4], 128
    $region44: #{tpu_custom_call.1} parent=1 // pred_fallthru
      _
    %1388 = vsyncpa [#allocation3], 1
    %1389 = vsyncpa [#allocation6], 1
    %1390 = vsyncpa [#allocation4], 1

</llo_original>
